<compile_context>
chip_gen: v7x
topology: tpu7x:2x2x1
jax: 0.10.0
libtpu: 0.0.40
codegen_flags: <defaults>
</compile_context>

<pallas_src>
import jax
import jax.numpy as jnp
from jax import lax
from jax.experimental import pallas as pl
from jax.experimental.pallas import tpu as pltpu


_VMEM_LIMIT = 32 * 1024 * 1024     # scoped-VMEM limit requested from Mosaic
_VMEM_BUDGET = 24 * 1024 * 1024    # budget used for tile sizing (headroom left)


def _round_up(x, m):
    return ((x + m - 1) // m) * m


def _row_cap_from_vmem(bytes_per_row, resident_bytes, hi=2048):
    """Largest row tile whose double-buffered blocks fit the VMEM budget."""
    avail = max(_VMEM_BUDGET - 2 * resident_bytes, 2 << 20)
    cap = avail // (2 * bytes_per_row)
    cap = int(max(128, min(hi, cap)))
    return (cap // 8) * 8


def _pick_row_tile(n, cap):
    """Row tile (multiple of 8, or == n) + padded row count (== n when possible)."""
    cap = max(8, (cap // 8) * 8)
    if n <= cap:
        return n, n                       # single exact block, no padding
    t = cap
    while t >= 256:                       # prefer a divisor -> no host-side pad
        if n % t == 0:
            return t, n
        t -= 8
    return cap, _round_up(n, cap)         # fallback: pad the row dim


def _reorder_ifog(w):
    """PyTorch LSTM gate layout [i,f,g,o] -> [i,f,o,g] along the last dim."""
    H = w.shape[-1] // 4
    return jnp.concatenate(
        [w[..., :H], w[..., H:2 * H], w[..., 3 * H:], w[..., 2 * H:3 * H]],
        axis=-1)


# ---------------------------------------------------------------------------
# Kernel 1: encoder lin_1 + LSTM input->gate projections, both directions in
#           one wide (H, 8H) GEMM. Output is the stacked (2, rows, 4H) tensor.
# ---------------------------------------------------------------------------
def _enc_proj_kernel(x_ref, w1_ref, b1_ref, wih_ref, bih_ref, g_ref):
    e = jnp.dot(x_ref[...], w1_ref[...],
                preferred_element_type=jnp.float32) + b1_ref[...]
    g = jnp.dot(e, wih_ref[...],
                preferred_element_type=jnp.float32) + bih_ref[...]   # (tile, 8H)
    G = g.shape[-1] // 2
    g_ref[0] = g[:, :G].astype(g_ref.dtype)
    g_ref[1] = g[:, G:].astype(g_ref.dtype)


# ---------------------------------------------------------------------------
# Kernel 2: bidirectional LSTM, time-chunked.
#   grid = (2 directions [parallel], T_pad // TT chunks [arbitrary])
#   (h, c) carried in VMEM scratch; packed-sequence semantics via in-kernel
#   length mask (padded steps freeze state and emit zeros).
# ---------------------------------------------------------------------------
def _lstm_kernel(gx_ref, lens_ref, whh_ref, h_out_ref, h_sc, c_sc):
    d = pl.program_id(0)                 # direction: 0 = forward, 1 = backward
    c = pl.program_id(1)                 # time-chunk grid index
    n_chunks = pl.num_programs(1)

    @pl.when(c == 0)                     # first chunk of EACH direction
    def _():
        h_sc[...] = jnp.zeros_like(h_sc)
        c_sc[...] = jnp.zeros_like(c_sc)

    TT = gx_ref.shape[0]
    H = h_sc.shape[-1]
    whh = whh_ref[...]                   # (H, 4H), resident for the whole chunk
    lens = lens_ref[...]                 # (B, 1) int32

    # Absolute start time of this chunk (must match the time index_map).
    t0 = (c + d * (n_chunks - 1 - 2 * c)) * TT

    def step(idx, carry):
        # forward: s = idx ; backward: s = TT - 1 - idx
        s = idx + d * (TT - 1 - 2 * idx)
        gx = gx_ref[s]                                       # (B, 4H)
        m = (t0 + s < lens).astype(jnp.float32)              # (B, 1) valid mask
        h_prev = h_sc[...]
        c_prev = c_sc[...]
        gates = gx + jnp.dot(h_prev, whh, preferred_element_type=jnp.float32)
        sig = jax.nn.sigmoid(gates[:, :3 * H])               # [i | f | o]
        g_t = jnp.tanh(gates[:, 3 * H:])
        i_t = sig[:, :H]
        f_t = sig[:, H:2 * H]
        o_t = sig[:, 2 * H:3 * H]
        c_new = f_t * c_prev + i_t * g_t
        h_new = o_t * jnp.tanh(c_new)
        # Padded steps: state frozen, zero emitted (pad_packed_sequence).
        c_sc[...] = m * c_new + (1.0 - m) * c_prev
        h_sc[...] = m * h_new + (1.0 - m) * h_prev
        h_out_ref[s] = (m * h_new).astype(h_out_ref.dtype)
        return carry

    lax.fori_loop(0, TT, step, 0)


# ---------------------------------------------------------------------------
# Kernel 3: decoder Linear -> ReLU -> LayerNorm -> Linear, fused.
#   First matmul split over the two LSTM directions (no concat needed).
# ---------------------------------------------------------------------------
def _decoder_kernel(h_ref, w1f_ref, w1b_ref, b1_ref, gam_ref, bet_ref,
                    w2_ref, b2_ref, o_ref):
    h1 = (jnp.dot(h_ref[0], w1f_ref[...], preferred_element_type=jnp.float32)
          + jnp.dot(h_ref[1], w1b_ref[...], preferred_element_type=jnp.float32)
          + b1_ref[...])
    # TODO(synk): nn.Dropout is identity at inference; no RNG mask applied.
    h1 = jnp.maximum(h1, 0.0)
    mean = jnp.mean(h1, axis=-1, keepdims=True)
    var = jnp.mean((h1 - mean) ** 2, axis=-1, keepdims=True)
    hn = (h1 - mean) * lax.rsqrt(var + 1e-5)
    hn = hn * gam_ref[...] + bet_ref[...]
    o_ref[...] = (jnp.dot(hn, w2_ref[...], preferred_element_type=jnp.float32)
                  + b2_ref[...]).astype(o_ref.dtype)


# ---------------------------------------------------------------------------
# Wrappers
# ---------------------------------------------------------------------------
def _encoder_projections(x2, w1, b1, wih, bih, *, H):
    """x2: (N, I) time-major rows -> stacked gate tensor (2, N, 4H) f32."""
    N, I = x2.shape
    G = 4 * H
    resident = 4 * (I * H + H * 2 * G + H + 2 * G)
    cap = _row_cap_from_vmem(4 * (I + 2 * G), resident)
    tile, n_pad = _pick_row_tile(N, cap)
    if n_pad != N:
        x2 = jnp.pad(x2, ((0, n_pad - N), (0, 0)))

    const = lambda i: (0, 0)
    g = pl.pallas_call(
        _enc_proj_kernel,
        out_shape=jax.ShapeDtypeStruct((2, n_pad, G), jnp.float32),
        grid_spec=pltpu.PrefetchScalarGridSpec(
            num_scalar_prefetch=0,
            grid=(n_pad // tile,),
            in_specs=[
                pl.BlockSpec((tile, I), lambda i: (i, 0)),
                pl.BlockSpec((I, H), const),
                pl.BlockSpec((1, H), const),
                pl.BlockSpec((H, 2 * G), const),
                pl.BlockSpec((1, 2 * G), const),
            ],
            out_specs=pl.BlockSpec((2, tile, G), lambda i: (0, i, 0)),
        ),
        compiler_params=pltpu.CompilerParams(
            dimension_semantics=("parallel",),
            vmem_limit_bytes=_VMEM_LIMIT),
    )(x2, w1, b1, wih, bih)
    return g[:, :N, :] if n_pad != N else g


def _lstm_bidir(gx, lens2, whh, *, TT):
    """gx: (2, T_pad, B, 4H), lens2: (B,1) int32, whh: (2, H, 4H) -> (2, T_pad, B, H)."""
    _, T_pad, B, G = gx.shape
    H = G // 4
    Tc = T_pad // TT

    def tmap(d, c):
        # forward direction reads chunk c, backward reads chunk Tc-1-c
        return (d, c + d * (Tc - 1 - 2 * c), 0, 0)

    return pl.pallas_call(
        _lstm_kernel,
        out_shape=jax.ShapeDtypeStruct((2, T_pad, B, H), jnp.float32),
        grid_spec=pltpu.PrefetchScalarGridSpec(
            num_scalar_prefetch=0,
            grid=(2, Tc),
            in_specs=[
                pl.BlockSpec((None, TT, B, G), tmap),
                pl.BlockSpec((B, 1), lambda d, c: (0, 0)),
                pl.BlockSpec((None, H, G), lambda d, c: (d, 0, 0)),
            ],
            out_specs=pl.BlockSpec((None, TT, B, H), tmap),
            scratch_shapes=[pltpu.VMEM((B, H), jnp.float32),
                            pltpu.VMEM((B, H), jnp.float32)],
        ),
        compiler_params=pltpu.CompilerParams(
            dimension_semantics=("parallel", "arbitrary"),
            vmem_limit_bytes=_VMEM_LIMIT),
    )(gx, lens2, whh)


def _decoder_forward(h2, dec_w1, dec_b1, ln_gamma, ln_beta, dec_w2, dec_b2):
    """h2: stacked LSTM output (2, N, H) -> (N, O) f32, rows time-major."""
    _, N, H = h2.shape
    D = 2 * H
    O = dec_b2.shape[0]
    O_pad = _round_up(O, 128)                       # lane-dense output
    w1f = dec_w1[:H, :]
    w1b = dec_w1[H:, :]
    b1 = dec_b1.reshape(1, D)
    gam = ln_gamma.reshape(1, D)
    bet = ln_beta.reshape(1, D)
    w2 = jnp.pad(dec_w2, ((0, 0), (0, O_pad - O)))
    b2 = jnp.pad(dec_b2, (0, O_pad - O)).reshape(1, O_pad)

    resident = 4 * (D * D + D * O_pad + 4 * D + O_pad)
    cap = _row_cap_from_vmem(4 * (2 * H + O_pad), resident)
    tile, n_pad = _pick_row_tile(N, cap)
    if n_pad != N:
        h2 = jnp.pad(h2, ((0, 0), (0, n_pad - N), (0, 0)))

    const = lambda i: (0, 0)
    out = pl.pallas_call(
        _decoder_kernel,
        out_shape=jax.ShapeDtypeStruct((n_pad, O_pad), jnp.float32),
        grid_spec=pltpu.PrefetchScalarGridSpec(
            num_scalar_prefetch=0,
            grid=(n_pad // tile,),
            in_specs=[
                pl.BlockSpec((2, tile, H), lambda i: (0, i, 0)),
                pl.BlockSpec((H, D), const),
                pl.BlockSpec((H, D), const),
                pl.BlockSpec((1, D), const),
                pl.BlockSpec((1, D), const),
                pl.BlockSpec((1, D), const),
                pl.BlockSpec((D, O_pad), const),
                pl.BlockSpec((1, O_pad), const),
            ],
            out_specs=pl.BlockSpec((tile, O_pad), lambda i: (i, 0)),
        ),
        compiler_params=pltpu.CompilerParams(
            dimension_semantics=("parallel",),
            vmem_limit_bytes=_VMEM_LIMIT),
    )(h2, w1f, w1b, b1, gam, bet, w2, b2)
    return out[:N, :O]


def recon_mockingjoy_forward(x, lens, params, *, time_tile=128):
    """ReconMockingjoyNet.forward: x [B,T,I], lens [B] -> [B,T,O]."""
    B, T, I = x.shape
    H = params["w_hh_f_t"].shape[0]
    G = 4 * H
    O = params["dec_b2"].shape[0]

    # Kernel-ready weights: gate order [i,f,o,g]; both W_ih fused to (H, 8H).
    w_ih = jnp.concatenate([_reorder_ifog(params["w_ih_f_t"]),
                            _reorder_ifog(params["w_ih_b_t"])], axis=1)
    b_ih = jnp.concatenate([_reorder_ifog(params["b_f"]),
                            _reorder_ifog(params["b_b"])]).reshape(1, 2 * G)
    whh = jnp.stack([_reorder_ifog(params["w_hh_f_t"]),
                     _reorder_ifog(params["w_hh_b_t"])])          # (2, H, 4H)

    # Time chunk: VMEM-aware, multiple of 8, no larger than needed for T.
    step_bytes = 4 * B * (G + H)
    tt_cap = max(8, min(256, ((_VMEM_BUDGET // (2 * step_bytes)) // 8) * 8))
    TT = int(min(max(8, time_tile), tt_cap, _round_up(T, 8)))
    TT = max(8, (TT // 8) * 8)
    T_pad = _round_up(T, TT)

    # Time-major input (one small transpose of x, padded in time if needed).
    x_tm = jnp.transpose(x, (1, 0, 2))
    if T_pad != T:
        x_tm = jnp.pad(x_tm, ((0, T_pad - T), (0, 0), (0, 0)))
    x2 = x_tm.reshape(T_pad * B, I)

    gx = _encoder_projections(x2, params["enc_w1"],
                              params["enc_b1"].reshape(1, H),
                              w_ih, b_ih, H=H)                    # (2, T_pad*B, 4H)
    gx = gx.reshape(2, T_pad, B, G)

    lens2 = lens.astype(jnp.int32).reshape(B, 1)
    h = _lstm_bidir(gx, lens2, whh, TT=TT)                        # (2, T_pad, B, H)

    out = _decoder_forward(h.reshape(2, T_pad * B, H),
                           params["dec_w1"], params["dec_b1"],
                           params["ln_gamma"], params["ln_beta"],
                           params["dec_w2"], params["dec_b2"])    # (T_pad*B, O)
    return out.reshape(T_pad, B, O)[:T].transpose(1, 0, 2)        # (B, T, O)


# ---------------------------------------------------------------------------
# Parameters + pure-JAX reference
# ---------------------------------------------------------------------------
def _init_params(key, enc_size_list, dec_size_list):
    I = enc_size_list[0]
    H = enc_size_list[3]
    Dd = dec_size_list[3]          # decoder hidden == 2*H (bi-LSTM output)
    O = dec_size_list[0]
    assert Dd == 2 * H, "dec_size_list[3] must equal 2 * enc hidden size"
    ks = jax.random.split(key, 12)

    def uni(k, shape, fan_in):
        b = 1.0 / jnp.sqrt(jnp.float32(fan_in))
        return jax.random.uniform(k, shape, jnp.float32, -b, b)

    return dict(
        enc_w1=uni(ks[0], (I, H), I),
        enc_b1=uni(ks[1], (H,), I),
        w_ih_f_t=uni(ks[2], (H, 4 * H), H),
        w_hh_f_t=uni(ks[3], (H, 4 * H), H),
        b_f=uni(ks[4], (4 * H,), H),        # b_ih + b_hh folded together
        w_ih_b_t=uni(ks[5], (H, 4 * H), H),
        w_hh_b_t=uni(ks[6], (H, 4 * H), H),
        b_b=uni(ks[7], (4 * H,), H),
        dec_w1=uni(ks[8], (Dd, Dd), Dd),
        dec_b1=uni(ks[9], (Dd,), Dd),
        ln_gamma=jnp.ones((Dd,), jnp.float32),
        ln_beta=jnp.zeros((Dd,), jnp.float32),
        dec_w2=uni(ks[10], (Dd, O), Dd),
        dec_b2=uni(ks[11], (O,), Dd),
    )


def _reference_forward(x, lens, p):
    dot = lambda a, b: jnp.dot(a, b, precision=lax.Precision.HIGHEST)
    B, T, _ = x.shape
    H = p["w_hh_f_t"].shape[0]
    enc_x = dot(x, p["enc_w1"]) + p["enc_b1"]
    mask = (jnp.arange(T)[:, None] < lens[None, :]).astype(jnp.float32)[:, :, None]
    gx_f = (dot(enc_x, p["w_ih_f_t"]) + p["b_f"]).transpose(1, 0, 2)
    gx_b = (dot(enc_x, p["w_ih_b_t"]) + p["b_b"]).transpose(1, 0, 2)

    def run(gx, w_hh_t, reverse):
        def step(carry, inp):
            h, c = carry
            g_x, m = inp
            gates = g_x + dot(h, w_hh_t)
            i = jax.nn.sigmoid(gates[:, :H])
            f = jax.nn.sigmoid(gates[:, H:2 * H])
            g = jnp.tanh(gates[:, 2 * H:3 * H])
            o = jax.nn.sigmoid(gates[:, 3 * H:])
            c_new = f * c + i * g
            h_new = o * jnp.tanh(c_new)
            c = m * c_new + (1.0 - m) * c
            h = m * h_new + (1.0 - m) * h
            return (h, c), m * h_new
        init = (jnp.zeros((B, H), jnp.float32), jnp.zeros((B, H), jnp.float32))
        _, outs = lax.scan(step, init, (gx, mask), reverse=reverse)
        return outs

    h_f = run(gx_f, p["w_hh_f_t"], False)
    h_b = run(gx_b, p["w_hh_b_t"], True)
    enc_out = jnp.concatenate([h_f, h_b], axis=-1).transpose(1, 0, 2)

    h1 = jnp.maximum(dot(enc_out, p["dec_w1"]) + p["dec_b1"], 0.0)
    mean = jnp.mean(h1, -1, keepdims=True)
    var = jnp.mean((h1 - mean) ** 2, -1, keepdims=True)
    hn = (h1 - mean) * lax.rsqrt(var + 1e-5)
    hn = hn * p["ln_gamma"] + p["ln_beta"]
    return dot(hn, p["dec_w2"]) + p["dec_b2"]


if __name__ == "__main__":
    key = jax.random.PRNGKey(0)
    k_p, k_x = jax.random.split(key)

    B, T = 2, 8
    enc_size_list = [80, 0, 0, 64]     # [input_dim, -, -, enc_hidden]
    dec_size_list = [80, 0, 0, 128]    # [output_dim, -, -, 2*enc_hidden]

    params = _init_params(k_p, enc_size_list, dec_size_list)
    x = jax.random.normal(k_x, (B, T, enc_size_list[0]), jnp.float32)
    lens = jnp.array([T, T - 3], dtype=jnp.int32)   # variable lengths, max == T

    fwd = jax.jit(lambda xx, ll: recon_mockingjoy_forward(xx, ll, params))
    out = jax.block_until_ready(fwd(x, lens))
    ref = jax.block_until_ready(_reference_forward(x, lens, params))

    assert out.shape == (B, T, dec_size_list[0])
    assert bool(jnp.all(jnp.isfinite(out)))
    max_err = float(jnp.max(jnp.abs(out - ref)))
    assert jnp.allclose(out, ref, atol=5e-4, rtol=5e-4), f"max_err={max_err}"

    print("KERNEL_OK")
</pallas_src>

<mosaic_0001>
module attributes {stable_mosaic.version = 11 : i64} {
  func.func @_enc_proj_kernel(%arg0: i32, %arg1: memref<16x80xf32, #tpu.memory_space<vmem>>, %arg2: memref<80x64xf32, #tpu.memory_space<vmem>>, %arg3: memref<1x64xf32, #tpu.memory_space<vmem>>, %arg4: memref<64x512xf32, #tpu.memory_space<vmem>>, %arg5: memref<1x512xf32, #tpu.memory_space<vmem>>, %arg6: memref<2x16x256xf32, #tpu.memory_space<vmem>>) attributes {dimension_semantics = [#tpu.dimension_semantics<parallel>], iteration_bounds = array<i64: 1>, scalar_prefetch = 0 : i64, scratch_operands = 0 : i64, tpu.core_type = #tpu.core_type<tc>, window_params = [{transform_indices = @transform_0, window_bounds = array<i64: 16, 80>}, {pipeline_mode = #tpu.pipeline_mode<synchronous>, transform_indices = @transform_1, window_bounds = array<i64: 80, 64>}, {pipeline_mode = #tpu.pipeline_mode<synchronous>, transform_indices = @transform_2, window_bounds = array<i64: 1, 64>}, {pipeline_mode = #tpu.pipeline_mode<synchronous>, transform_indices = @transform_3, window_bounds = array<i64: 64, 512>}, {pipeline_mode = #tpu.pipeline_mode<synchronous>, transform_indices = @transform_4, window_bounds = array<i64: 1, 512>}, {transform_indices = @transform_5, window_bounds = array<i64: 2, 16, 256>}]} {
    %c0 = arith.constant 0 : index
    %c0_0 = arith.constant 0 : index
    %0 = vector.load %arg1[%c0, %c0_0] : memref<16x80xf32, #tpu.memory_space<vmem>>, vector<16x80xf32>
    %c0_1 = arith.constant 0 : index
    %c0_2 = arith.constant 0 : index
    %1 = vector.load %arg2[%c0_1, %c0_2] : memref<80x64xf32, #tpu.memory_space<vmem>>, vector<80x64xf32>
    %cst = arith.constant dense<0.000000e+00> : vector<16x64xf32>
    %2 = tpu.matmul %0, %1, %cst {dimension_numbers = #tpu.dot_dimension_numbers<[1], [0], [0], [1], [0, 0, 1, 1], [], []>} : vector<16x80xf32>, vector<80x64xf32>, vector<16x64xf32> -> vector<16x64xf32>
    %c0_3 = arith.constant 0 : index
    %c0_4 = arith.constant 0 : index
    %3 = vector.load %arg3[%c0_3, %c0_4] : memref<1x64xf32, #tpu.memory_space<vmem>>, vector<1x64xf32>
    %4 = vector.broadcast %3 : vector<1x64xf32> to vector<16x64xf32>
    %5 = arith.addf %2, %4 : vector<16x64xf32>
    %c0_5 = arith.constant 0 : index
    %c0_6 = arith.constant 0 : index
    %6 = vector.load %arg4[%c0_5, %c0_6] : memref<64x512xf32, #tpu.memory_space<vmem>>, vector<64x512xf32>
    %cst_7 = arith.constant dense<0.000000e+00> : vector<16x512xf32>
    %7 = tpu.matmul %5, %6, %cst_7 {dimension_numbers = #tpu.dot_dimension_numbers<[1], [0], [0], [1], [0, 0, 1, 1], [], []>} : vector<16x64xf32>, vector<64x512xf32>, vector<16x512xf32> -> vector<16x512xf32>
    %c0_8 = arith.constant 0 : index
    %c0_9 = arith.constant 0 : index
    %8 = vector.load %arg5[%c0_8, %c0_9] : memref<1x512xf32, #tpu.memory_space<vmem>>, vector<1x512xf32>
    %9 = vector.broadcast %8 : vector<1x512xf32> to vector<16x512xf32>
    %10 = arith.addf %7, %9 : vector<16x512xf32>
    %11 = vector.extract_strided_slice %10 {offsets = [0, 0], sizes = [16, 256], strides = [1, 1]} : vector<16x512xf32> to vector<16x256xf32>
    %c0_10 = arith.constant 0 : index
    %c0_11 = arith.constant 0 : index
    %c0_12 = arith.constant 0 : index
    %12 = vector.load %arg6[%c0_10, %c0_11, %c0_12] : memref<2x16x256xf32, #tpu.memory_space<vmem>>, vector<1x16x256xf32>
    %13 = vector.shape_cast %12 : vector<1x16x256xf32> to vector<16x256xf32>
    %14 = vector.shape_cast %11 : vector<16x256xf32> to vector<1x16x256xf32>
    tpu.vector_store %arg6[%c0_10, %c0_11, %c0_12], %14 {strides = array<i32>} : memref<2x16x256xf32, #tpu.memory_space<vmem>>, vector<1x16x256xf32>,
    %15 = vector.extract_strided_slice %10 {offsets = [0, 256], sizes = [16, 256], strides = [1, 1]} : vector<16x512xf32> to vector<16x256xf32>
    %c1 = arith.constant 1 : index
    %c0_13 = arith.constant 0 : index
    %c0_14 = arith.constant 0 : index
    %16 = vector.load %arg6[%c1, %c0_13, %c0_14] : memref<2x16x256xf32, #tpu.memory_space<vmem>>, vector<1x16x256xf32>
    %17 = vector.shape_cast %16 : vector<1x16x256xf32> to vector<16x256xf32>
    %18 = vector.shape_cast %15 : vector<16x256xf32> to vector<1x16x256xf32>
    tpu.vector_store %arg6[%c1, %c0_13, %c0_14], %18 {strides = array<i32>} : memref<2x16x256xf32, #tpu.memory_space<vmem>>, vector<1x16x256xf32>,
    return
  }
  func.func @transform_0(%arg0: i32) -> (i32, i32) {
    %c0_i32 = arith.constant 0 : i32
    %c0_i32_0 = arith.constant 0 : i32
    return %arg0, %c0_i32 : i32, i32
  }
  func.func @transform_1(%arg0: i32) -> (i32, i32) {
    %c0_i32 = arith.constant 0 : i32
    %c0_i32_0 = arith.constant 0 : i32
    %c0_i32_1 = arith.constant 0 : i32
    return %c0_i32, %c0_i32_0 : i32, i32
  }
  func.func @transform_2(%arg0: i32) -> (i32, i32) {
    %c0_i32 = arith.constant 0 : i32
    %c0_i32_0 = arith.constant 0 : i32
    %c0_i32_1 = arith.constant 0 : i32
    return %c0_i32, %c0_i32_0 : i32, i32
  }
  func.func @transform_3(%arg0: i32) -> (i32, i32) {
    %c0_i32 = arith.constant 0 : i32
    %c0_i32_0 = arith.constant 0 : i32
    %c0_i32_1 = arith.constant 0 : i32
    return %c0_i32, %c0_i32_0 : i32, i32
  }
  func.func @transform_4(%arg0: i32) -> (i32, i32) {
    %c0_i32 = arith.constant 0 : i32
    %c0_i32_0 = arith.constant 0 : i32
    %c0_i32_1 = arith.constant 0 : i32
    return %c0_i32, %c0_i32_0 : i32, i32
  }
  func.func @transform_5(%arg0: i32) -> (i32, i32, i32) {
    %c0_i32 = arith.constant 0 : i32
    %c0_i32_0 = arith.constant 0 : i32
    %c0_i32_1 = arith.constant 0 : i32
    return %c0_i32, %arg0, %c0_i32_0 : i32, i32, i32
  }
}

module attributes {stable_mosaic.version = 11 : i64} {
  func.func @_decoder_kernel(%arg0: i32, %arg1: memref<2x16x64xf32, #tpu.memory_space<vmem>>, %arg2: memref<64x128xf32, #tpu.memory_space<vmem>>, %arg3: memref<64x128xf32, #tpu.memory_space<vmem>>, %arg4: memref<1x128xf32, #tpu.memory_space<vmem>>, %arg5: memref<1x128xf32, #tpu.memory_space<vmem>>, %arg6: memref<1x128xf32, #tpu.memory_space<vmem>>, %arg7: memref<128x128xf32, #tpu.memory_space<vmem>>, %arg8: memref<1x128xf32, #tpu.memory_space<vmem>>, %arg9: memref<16x128xf32, #tpu.memory_space<vmem>>) attributes {dimension_semantics = [#tpu.dimension_semantics<parallel>], iteration_bounds = array<i64: 1>, scalar_prefetch = 0 : i64, scratch_operands = 0 : i64, tpu.core_type = #tpu.core_type<tc>, window_params = [{transform_indices = @transform_0, window_bounds = array<i64: 2, 16, 64>}, {pipeline_mode = #tpu.pipeline_mode<synchronous>, transform_indices = @transform_1, window_bounds = array<i64: 64, 128>}, {pipeline_mode = #tpu.pipeline_mode<synchronous>, transform_indices = @transform_2, window_bounds = array<i64: 64, 128>}, {pipeline_mode = #tpu.pipeline_mode<synchronous>, transform_indices = @transform_3, window_bounds = array<i64: 1, 128>}, {pipeline_mode = #tpu.pipeline_mode<synchronous>, transform_indices = @transform_4, window_bounds = array<i64: 1, 128>}, {pipeline_mode = #tpu.pipeline_mode<synchronous>, transform_indices = @transform_5, window_bounds = array<i64: 1, 128>}, {pipeline_mode = #tpu.pipeline_mode<synchronous>, transform_indices = @transform_6, window_bounds = array<i64: 128, 128>}, {pipeline_mode = #tpu.pipeline_mode<synchronous>, transform_indices = @transform_7, window_bounds = array<i64: 1, 128>}, {transform_indices = @transform_8, window_bounds = array<i64: 16, 128>}]} {
    %c0 = arith.constant 0 : index
    %c0_0 = arith.constant 0 : index
    %c0_1 = arith.constant 0 : index
    %0 = vector.load %arg1[%c0, %c0_0, %c0_1] : memref<2x16x64xf32, #tpu.memory_space<vmem>>, vector<1x16x64xf32>
    %1 = vector.shape_cast %0 : vector<1x16x64xf32> to vector<16x64xf32>
    %c0_2 = arith.constant 0 : index
    %c0_3 = arith.constant 0 : index
    %2 = vector.load %arg2[%c0_2, %c0_3] : memref<64x128xf32, #tpu.memory_space<vmem>>, vector<64x128xf32>
    %cst = arith.constant dense<0.000000e+00> : vector<16x128xf32>
    %3 = tpu.matmul %1, %2, %cst {dimension_numbers = #tpu.dot_dimension_numbers<[1], [0], [0], [1], [0, 0, 1, 1], [], []>} : vector<16x64xf32>, vector<64x128xf32>, vector<16x128xf32> -> vector<16x128xf32>
    %c1 = arith.constant 1 : index
    %c0_4 = arith.constant 0 : index
    %c0_5 = arith.constant 0 : index
    %4 = vector.load %arg1[%c1, %c0_4, %c0_5] : memref<2x16x64xf32, #tpu.memory_space<vmem>>, vector<1x16x64xf32>
    %5 = vector.shape_cast %4 : vector<1x16x64xf32> to vector<16x64xf32>
    %c0_6 = arith.constant 0 : index
    %c0_7 = arith.constant 0 : index
    %6 = vector.load %arg3[%c0_6, %c0_7] : memref<64x128xf32, #tpu.memory_space<vmem>>, vector<64x128xf32>
    %cst_8 = arith.constant dense<0.000000e+00> : vector<16x128xf32>
    %7 = tpu.matmul %5, %6, %cst_8 {dimension_numbers = #tpu.dot_dimension_numbers<[1], [0], [0], [1], [0, 0, 1, 1], [], []>} : vector<16x64xf32>, vector<64x128xf32>, vector<16x128xf32> -> vector<16x128xf32>
    %8 = arith.addf %3, %7 : vector<16x128xf32>
    %c0_9 = arith.constant 0 : index
    %c0_10 = arith.constant 0 : index
    %9 = vector.load %arg4[%c0_9, %c0_10] : memref<1x128xf32, #tpu.memory_space<vmem>>, vector<1x128xf32>
    %10 = vector.broadcast %9 : vector<1x128xf32> to vector<16x128xf32>
    %11 = arith.addf %8, %10 : vector<16x128xf32>
    %cst_11 = arith.constant 0.000000e+00 : f32
    %12 = vector.broadcast %cst_11 : f32 to vector<16x128xf32>
    %13 = arith.maximumf %11, %12 : vector<16x128xf32>
    %cst_12 = arith.constant dense<0.000000e+00> : vector<16xf32>
    %14 = vector.multi_reduction <add>, %13, %cst_12 [1] : vector<16x128xf32> to vector<16xf32>
    %15 = vector.shape_cast %14 : vector<16xf32> to vector<16x1xf32>
    %cst_13 = arith.constant 1.280000e+02 : f32
    %16 = vector.broadcast %cst_13 : f32 to vector<16x1xf32>
    %17 = arith.divf %15, %16 : vector<16x1xf32>
    %18 = vector.broadcast %17 : vector<16x1xf32> to vector<16x128xf32>
    %19 = arith.subf %13, %18 : vector<16x128xf32>
    %20 = arith.mulf %19, %19 : vector<16x128xf32>
    %cst_14 = arith.constant dense<0.000000e+00> : vector<16xf32>
    %21 = vector.multi_reduction <add>, %20, %cst_14 [1] : vector<16x128xf32> to vector<16xf32>
    %22 = vector.shape_cast %21 : vector<16xf32> to vector<16x1xf32>
    %cst_15 = arith.constant 1.280000e+02 : f32
    %23 = vector.broadcast %cst_15 : f32 to vector<16x1xf32>
    %24 = arith.divf %22, %23 : vector<16x1xf32>
    %25 = vector.broadcast %17 : vector<16x1xf32> to vector<16x128xf32>
    %26 = arith.subf %13, %25 : vector<16x128xf32>
    %cst_16 = arith.constant 9.99999974E-6 : f32
    %27 = vector.broadcast %cst_16 : f32 to vector<16x1xf32>
    %28 = arith.addf %24, %27 : vector<16x1xf32>
    %29 = math.rsqrt %28 : vector<16x1xf32>
    %30 = vector.broadcast %29 : vector<16x1xf32> to vector<16x128xf32>
    %31 = arith.mulf %26, %30 : vector<16x128xf32>
    %c0_17 = arith.constant 0 : index
    %c0_18 = arith.constant 0 : index
    %32 = vector.load %arg5[%c0_17, %c0_18] : memref<1x128xf32, #tpu.memory_space<vmem>>, vector<1x128xf32>
    %33 = vector.broadcast %32 : vector<1x128xf32> to vector<16x128xf32>
    %34 = arith.mulf %31, %33 : vector<16x128xf32>
    %c0_19 = arith.constant 0 : index
    %c0_20 = arith.constant 0 : index
    %35 = vector.load %arg6[%c0_19, %c0_20] : memref<1x128xf32, #tpu.memory_space<vmem>>, vector<1x128xf32>
    %36 = vector.broadcast %35 : vector<1x128xf32> to vector<16x128xf32>
    %37 = arith.addf %34, %36 : vector<16x128xf32>
    %c0_21 = arith.constant 0 : index
    %c0_22 = arith.constant 0 : index
    %38 = vector.load %arg7[%c0_21, %c0_22] : memref<128x128xf32, #tpu.memory_space<vmem>>, vector<128x128xf32>
    %cst_23 = arith.constant dense<0.000000e+00> : vector<16x128xf32>
    %39 = tpu.matmul %37, %38, %cst_23 {dimension_numbers = #tpu.dot_dimension_numbers<[1], [0], [0], [1], [0, 0, 1, 1], [], []>} : vector<16x128xf32>, vector<128x128xf32>, vector<16x128xf32> -> vector<16x128xf32>
    %c0_24 = arith.constant 0 : index
    %c0_25 = arith.constant 0 : index
    %40 = vector.load %arg8[%c0_24, %c0_25] : memref<1x128xf32, #tpu.memory_space<vmem>>, vector<1x128xf32>
    %41 = vector.broadcast %40 : vector<1x128xf32> to vector<16x128xf32>
    %42 = arith.addf %39, %41 : vector<16x128xf32>
    %c0_26 = arith.constant 0 : index
    %c0_27 = arith.constant 0 : index
    %43 = vector.load %arg9[%c0_26, %c0_27] : memref<16x128xf32, #tpu.memory_space<vmem>>, vector<16x128xf32>
    tpu.vector_store %arg9[%c0_26, %c0_27], %42 {strides = array<i32>} : memref<16x128xf32, #tpu.memory_space<vmem>>, vector<16x128xf32>,
    return
  }
  func.func @transform_0(%arg0: i32) -> (i32, i32, i32) {
    %c0_i32 = arith.constant 0 : i32
    %c0_i32_0 = arith.constant 0 : i32
    %c0_i32_1 = arith.constant 0 : i32
    return %c0_i32, %arg0, %c0_i32_0 : i32, i32, i32
  }
  func.func @transform_1(%arg0: i32) -> (i32, i32) {
    %c0_i32 = arith.constant 0 : i32
    %c0_i32_0 = arith.constant 0 : i32
    %c0_i32_1 = arith.constant 0 : i32
    return %c0_i32, %c0_i32_0 : i32, i32
  }
  func.func @transform_2(%arg0: i32) -> (i32, i32) {
    %c0_i32 = arith.constant 0 : i32
    %c0_i32_0 = arith.constant 0 : i32
    %c0_i32_1 = arith.constant 0 : i32
    return %c0_i32, %c0_i32_0 : i32, i32
  }
  func.func @transform_3(%arg0: i32) -> (i32, i32) {
    %c0_i32 = arith.constant 0 : i32
    %c0_i32_0 = arith.constant 0 : i32
    %c0_i32_1 = arith.constant 0 : i32
    return %c0_i32, %c0_i32_0 : i32, i32
  }
  func.func @transform_4(%arg0: i32) -> (i32, i32) {
    %c0_i32 = arith.constant 0 : i32
    %c0_i32_0 = arith.constant 0 : i32
    %c0_i32_1 = arith.constant 0 : i32
    return %c0_i32, %c0_i32_0 : i32, i32
  }
  func.func @transform_5(%arg0: i32) -> (i32, i32) {
    %c0_i32 = arith.constant 0 : i32
    %c0_i32_0 = arith.constant 0 : i32
    %c0_i32_1 = arith.constant 0 : i32
    return %c0_i32, %c0_i32_0 : i32, i32
  }
  func.func @transform_6(%arg0: i32) -> (i32, i32) {
    %c0_i32 = arith.constant 0 : i32
    %c0_i32_0 = arith.constant 0 : i32
    %c0_i32_1 = arith.constant 0 : i32
    return %c0_i32, %c0_i32_0 : i32, i32
  }
  func.func @transform_7(%arg0: i32) -> (i32, i32) {
    %c0_i32 = arith.constant 0 : i32
    %c0_i32_0 = arith.constant 0 : i32
    %c0_i32_1 = arith.constant 0 : i32
    return %c0_i32, %c0_i32_0 : i32, i32
  }
  func.func @transform_8(%arg0: i32) -> (i32, i32) {
    %c0_i32 = arith.constant 0 : i32
    %c0_i32_0 = arith.constant 0 : i32
    return %arg0, %c0_i32 : i32, i32
  }
}

module attributes {stable_mosaic.version = 11 : i64} {
  func.func @_lstm_kernel(%arg0: i32, %arg1: i32, %arg2: memref<1x8x2x256xf32, #tpu.memory_space<vmem>>, %arg3: memref<2x1xi32, #tpu.memory_space<vmem>>, %arg4: memref<1x64x256xf32, #tpu.memory_space<vmem>>, %arg5: memref<1x8x2x64xf32, #tpu.memory_space<vmem>>, %arg6: memref<2x64xf32, #tpu.memory_space<vmem>>, %arg7: memref<2x64xf32, #tpu.memory_space<vmem>>) attributes {dimension_semantics = [#tpu.dimension_semantics<parallel>, #tpu.dimension_semantics<arbitrary>], iteration_bounds = array<i64: 2, 1>, scalar_prefetch = 0 : i64, scratch_operands = 2 : i64, tpu.core_type = #tpu.core_type<tc>, window_params = [{transform_indices = @transform_0, window_bounds = array<i64: 1, 8, 2, 256>}, {pipeline_mode = #tpu.pipeline_mode<synchronous>, transform_indices = @transform_1, window_bounds = array<i64: 2, 1>}, {transform_indices = @transform_2, window_bounds = array<i64: 1, 64, 256>}, {transform_indices = @transform_3, window_bounds = array<i64: 1, 8, 2, 64>}]} {
    %c0_i32 = arith.constant 0 : i32
    %0 = arith.cmpi eq, %arg1, %c0_i32 : i32
    %1 = arith.extui %0 : i1 to i32
    %c0_i32_0 = arith.constant 0 : i32
    %2 = arith.cmpi ne, %1, %c0_i32_0 : i32
    scf.if %2 {
      %cst = arith.constant 0.000000e+00 : f32
      %12 = vector.broadcast %cst : f32 to vector<2x64xf32>
      %c0_9 = arith.constant 0 : index
      %c0_10 = arith.constant 0 : index
      %13 = vector.load %arg6[%c0_9, %c0_10] : memref<2x64xf32, #tpu.memory_space<vmem>>, vector<2x64xf32>
      tpu.vector_store %arg6[%c0_9, %c0_10], %12 {strides = array<i32>} : memref<2x64xf32, #tpu.memory_space<vmem>>, vector<2x64xf32>,
      %cst_11 = arith.constant 0.000000e+00 : f32
      %14 = vector.broadcast %cst_11 : f32 to vector<2x64xf32>
      %c0_12 = arith.constant 0 : index
      %c0_13 = arith.constant 0 : index
      %15 = vector.load %arg7[%c0_12, %c0_13] : memref<2x64xf32, #tpu.memory_space<vmem>>, vector<2x64xf32>
      tpu.vector_store %arg7[%c0_12, %c0_13], %14 {strides = array<i32>} : memref<2x64xf32, #tpu.memory_space<vmem>>, vector<2x64xf32>,
    } else {
    }
    %c0 = arith.constant 0 : index
    %c0_1 = arith.constant 0 : index
    %c0_2 = arith.constant 0 : index
    %3 = vector.load %arg4[%c0, %c0_1, %c0_2] : memref<1x64x256xf32, #tpu.memory_space<vmem>>, vector<1x64x256xf32>
    %4 = vector.shape_cast %3 : vector<1x64x256xf32> to vector<64x256xf32>
    %c0_3 = arith.constant 0 : index
    %c0_4 = arith.constant 0 : index
    %5 = vector.load %arg3[%c0_3, %c0_4] : memref<2x1xi32, #tpu.memory_space<vmem>>, vector<2x1xi32>
    %c2_i32 = arith.constant 2 : i32
    %6 = arith.muli %c2_i32, %arg1 : i32
    %c0_i32_5 = arith.constant 0 : i32
    %7 = arith.subi %c0_i32_5, %6 : i32
    %8 = arith.muli %arg0, %7 : i32
    %9 = arith.addi %arg1, %8 : i32
    %c8_i32 = arith.constant 8 : i32
    %10 = arith.muli %9, %c8_i32 : i32
    %c0_i32_6 = arith.constant 0 : i32
    %c8_i32_7 = arith.constant 8 : i32
    %11 = arith.addi %c0_i32_6, %c8_i32_7 : i32
    %c1_i32 = arith.constant 1 : i32
    scf.for %arg8 = %c0_i32_6 to %11 step %c1_i32  : i32 {
      %c2_i32_9 = arith.constant 2 : i32
      %12 = arith.muli %c2_i32_9, %arg8 : i32
      %c7_i32 = arith.constant 7 : i32
      %13 = arith.subi %c7_i32, %12 : i32
      %14 = arith.muli %arg0, %13 : i32
      %15 = arith.addi %arg8, %14 : i32
      %c0_10 = arith.constant 0 : index
      %16 = arith.index_cast %15 : i32 to index
      %c0_11 = arith.constant 0 : index
      %c0_12 = arith.constant 0 : index
      %17 = vector.load %arg2[%c0_10, %16, %c0_11, %c0_12] : memref<1x8x2x256xf32, #tpu.memory_space<vmem>>, vector<1x1x2x256xf32>
      %18 = vector.shape_cast %17 : vector<1x1x2x256xf32> to vector<2x256xf32>
      %19 = arith.addi %10, %15 : i32
      %20 = vector.broadcast %19 : i32 to vector<2x1xi32>
      %21 = arith.cmpi slt, %20, %5 : vector<2x1xi32>
      %22 = arith.extui %21 : vector<2x1xi1> to vector<2x1xi32>
      %23 = arith.sitofp %22 : vector<2x1xi32> to vector<2x1xf32>
      %c0_13 = arith.constant 0 : index
      %c0_14 = arith.constant 0 : index
      %24 = vector.load %arg6[%c0_13, %c0_14] : memref<2x64xf32, #tpu.memory_space<vmem>>, vector<2x64xf32>
      %c0_15 = arith.constant 0 : index
      %c0_16 = arith.constant 0 : index
      %25 = vector.load %arg7[%c0_15, %c0_16] : memref<2x64xf32, #tpu.memory_space<vmem>>, vector<2x64xf32>
      %cst = arith.constant dense<0.000000e+00> : vector<2x256xf32>
      %26 = tpu.matmul %24, %4, %cst {dimension_numbers = #tpu.dot_dimension_numbers<[1], [0], [0], [1], [0, 0, 1, 1], [], []>} : vector<2x64xf32>, vector<64x256xf32>, vector<2x256xf32> -> vector<2x256xf32>
      %27 = arith.addf %18, %26 : vector<2x256xf32>
      %28 = vector.extract_strided_slice %27 {offsets = [0, 0], sizes = [2, 192], strides = [1, 1]} : vector<2x256xf32> to vector<2x192xf32>
      %29 = arith.negf %28 : vector<2x192xf32>
      %30 = math.exp %29 : vector<2x192xf32>
      %cst_17 = arith.constant 1.000000e+00 : f32
      %31 = vector.broadcast %cst_17 : f32 to vector<2x192xf32>
      %32 = arith.addf %31, %30 : vector<2x192xf32>
      %33 = arith.divf %31, %32 : vector<2x192xf32>
      %34 = vector.extract_strided_slice %27 {offsets = [0, 192], sizes = [2, 64], strides = [1, 1]} : vector<2x256xf32> to vector<2x64xf32>
      %35 = math.tanh %34 : vector<2x64xf32>
      %36 = vector.extract_strided_slice %33 {offsets = [0, 0], sizes = [2, 64], strides = [1, 1]} : vector<2x192xf32> to vector<2x64xf32>
      %37 = vector.extract_strided_slice %33 {offsets = [0, 64], sizes = [2, 64], strides = [1, 1]} : vector<2x192xf32> to vector<2x64xf32>
      %38 = vector.extract_strided_slice %33 {offsets = [0, 128], sizes = [2, 64], strides = [1, 1]} : vector<2x192xf32> to vector<2x64xf32>
      %39 = arith.mulf %37, %25 : vector<2x64xf32>
      %40 = arith.mulf %36, %35 : vector<2x64xf32>
      %41 = arith.addf %39, %40 : vector<2x64xf32>
      %42 = math.tanh %41 : vector<2x64xf32>
      %43 = arith.mulf %38, %42 : vector<2x64xf32>
      %44 = vector.broadcast %23 : vector<2x1xf32> to vector<2x64xf32>
      %45 = arith.mulf %44, %41 : vector<2x64xf32>
      %cst_18 = arith.constant 1.000000e+00 : f32
      %46 = vector.broadcast %cst_18 : f32 to vector<2x1xf32>
      %47 = arith.subf %46, %23 : vector<2x1xf32>
      %48 = vector.broadcast %47 : vector<2x1xf32> to vector<2x64xf32>
      %49 = arith.mulf %48, %25 : vector<2x64xf32>
      %50 = arith.addf %45, %49 : vector<2x64xf32>
      %c0_19 = arith.constant 0 : index
      %c0_20 = arith.constant 0 : index
      %51 = vector.load %arg7[%c0_19, %c0_20] : memref<2x64xf32, #tpu.memory_space<vmem>>, vector<2x64xf32>
      tpu.vector_store %arg7[%c0_19, %c0_20], %50 {strides = array<i32>} : memref<2x64xf32, #tpu.memory_space<vmem>>, vector<2x64xf32>,
      %52 = vector.broadcast %23 : vector<2x1xf32> to vector<2x64xf32>
      %53 = arith.mulf %52, %43 : vector<2x64xf32>
      %cst_21 = arith.constant 1.000000e+00 : f32
      %54 = vector.broadcast %cst_21 : f32 to vector<2x1xf32>
      %55 = arith.subf %54, %23 : vector<2x1xf32>
      %56 = vector.broadcast %55 : vector<2x1xf32> to vector<2x64xf32>
      %57 = arith.mulf %56, %24 : vector<2x64xf32>
      %58 = arith.addf %53, %57 : vector<2x64xf32>
      %c0_22 = arith.constant 0 : index
      %c0_23 = arith.constant 0 : index
      %59 = vector.load %arg6[%c0_22, %c0_23] : memref<2x64xf32, #tpu.memory_space<vmem>>, vector<2x64xf32>
      tpu.vector_store %arg6[%c0_22, %c0_23], %58 {strides = array<i32>} : memref<2x64xf32, #tpu.memory_space<vmem>>, vector<2x64xf32>,
      %60 = vector.broadcast %23 : vector<2x1xf32> to vector<2x64xf32>
      %61 = arith.mulf %60, %43 : vector<2x64xf32>
      %c0_24 = arith.constant 0 : index
      %62 = arith.index_cast %15 : i32 to index
      %c0_25 = arith.constant 0 : index
      %c0_26 = arith.constant 0 : index
      %63 = vector.load %arg5[%c0_24, %62, %c0_25, %c0_26] : memref<1x8x2x64xf32, #tpu.memory_space<vmem>>, vector<1x1x2x64xf32>
      %64 = vector.shape_cast %63 : vector<1x1x2x64xf32> to vector<2x64xf32>
      %65 = vector.shape_cast %61 : vector<2x64xf32> to vector<1x1x2x64xf32>
      tpu.vector_store %arg5[%c0_24, %62, %c0_25, %c0_26], %65 {strides = array<i32>} : memref<1x8x2x64xf32, #tpu.memory_space<vmem>>, vector<1x1x2x64xf32>,
    }
    %c8_i32_8 = arith.constant 8 : i32
    return
  }
  func.func @transform_0(%arg0: i32, %arg1: i32) -> (i32, i32, i32, i32) {
    %c2_i32 = arith.constant 2 : i32
    %0 = arith.muli %c2_i32, %arg1 : i32
    %c0_i32 = arith.constant 0 : i32
    %1 = arith.subi %c0_i32, %0 : i32
    %2 = arith.muli %arg0, %1 : i32
    %3 = arith.addi %arg1, %2 : i32
    %c0_i32_0 = arith.constant 0 : i32
    %c0_i32_1 = arith.constant 0 : i32
    %c0_i32_2 = arith.constant 0 : i32
    return %arg0, %3, %c0_i32_0, %c0_i32_1 : i32, i32, i32, i32
  }
  func.func @transform_1(%arg0: i32, %arg1: i32) -> (i32, i32) {
    %c0_i32 = arith.constant 0 : i32
    %c0_i32_0 = arith.constant 0 : i32
    %c0_i32_1 = arith.constant 0 : i32
    return %c0_i32, %c0_i32_0 : i32, i32
  }
  func.func @transform_2(%arg0: i32, %arg1: i32) -> (i32, i32, i32) {
    %c0_i32 = arith.constant 0 : i32
    %c0_i32_0 = arith.constant 0 : i32
    %c0_i32_1 = arith.constant 0 : i32
    return %arg0, %c0_i32, %c0_i32_0 : i32, i32, i32
  }
  func.func @transform_3(%arg0: i32, %arg1: i32) -> (i32, i32, i32, i32) {
    %c2_i32 = arith.constant 2 : i32
    %0 = arith.muli %c2_i32, %arg1 : i32
    %c0_i32 = arith.constant 0 : i32
    %1 = arith.subi %c0_i32, %0 : i32
    %2 = arith.muli %arg0, %1 : i32
    %3 = arith.addi %arg1, %2 : i32
    %c0_i32_0 = arith.constant 0 : i32
    %c0_i32_1 = arith.constant 0 : i32
    %c0_i32_2 = arith.constant 0 : i32
    return %arg0, %3, %c0_i32_0, %c0_i32_1 : i32, i32, i32, i32
  }
}

</mosaic_0001>

<llo_original>
// kernel: _lambda_.3
$region0: #{_lambda_.3}
  #allocation0 [shape = 'u32[]', space=smem, size = 0x4, offset = 0x4, fixed_abs, tag = 'smem constant byte address 0x4 - core index']
  #allocation1 [shape = 'u32[144,128]{1,0:T(1,128)}', space=vmem, size = 0x12000, scoped, tag = 'internal scratch']
  %s0 = inlined_call_operand.vmem [shape: f32[16,80], index: 0, kind: input, shape index: {}]
  %s1 = inlined_call_operand.vmem [shape: f32[80,64], index: 1, kind: input, shape index: {}]
  %s2 = inlined_call_operand.vmem [shape: f32[1,64], index: 2, kind: input, shape index: {}]
  %s3 = inlined_call_operand.hbm [shape: f32[64,512], index: 3, kind: input, shape index: {}]
  %s4 = inlined_call_operand.vmem [shape: f32[1,512], index: 4, kind: input, shape index: {}]
  %s5 = inlined_call_operand.vmem [shape: f32[2,16,256], index: 5, kind: output, shape index: {}]
  %s6 = sld [smem:[#allocation0]]
  $region34: #{_lambda_.3} parent=0
    _
  %s8 = ssub.s32 1, %s6
  %s9 = scalar_select 0, %s8, %s6
  $region1: #{_lambda_.3} parent=0
    #allocation2 [shape = 'u8[131072]{0}', space=vmem, size = 0x20000, scoped, tag = 'input window, operand 3, single buffered']
    #allocation3 [shape = 's32[1]{0}', space=sflag, size = 0x4, scoped, tag = 'scoped memory for _lambda_.3']
    %10 = vsyncpa [#allocation3], 0
    // Predicated region
    $region2: #{_lambda_.3} parent=1 // pred_check
      _
    $region3: #{_lambda_.3} parent=1 // pred_check_branch
      %12 = sbr.rel (0) target = $region5
    $region4: #{_lambda_.3} parent=1 // pred_region
      _
    $region5: #{_lambda_.3} parent=1 // pred_fallthru
      _
    // Predicated region
    $region6: #{_lambda_.3} parent=1 // pred_check
      _
    $region7: #{_lambda_.3} parent=1 // pred_check_branch
      %14 = sbr.rel (0) target = $region9
    $region8: #{_lambda_.3} parent=1 // pred_region
      _
    $region9: #{_lambda_.3} parent=1 // pred_fallthru
      _
    // Predicated region
    $region10: #{_lambda_.3} parent=1 // pred_check
      _
    $region11: #{_lambda_.3} parent=1 // pred_check_branch
      %16 = sbr.rel (0) target = $region13
    $region12: #{_lambda_.3} parent=1 // pred_region
      _
    $region13: #{_lambda_.3} parent=1 // pred_fallthru
      _
    // Predicated region
    $region14: #{_lambda_.3} parent=1 // pred_check
      _
    $region15: #{_lambda_.3} parent=1 // pred_check_branch
      %18 = sbr.rel (0) target = $region17
    $region16: #{_lambda_.3} parent=1 // pred_region
      %s20 = ssub.s32 4096, 4096
      %21 = vsyncadd [#allocation3], %s20
      %s22 = sshll.u32 [#allocation2], 4
      %s23 = int_to_ptr.vmem [resolvable:$true] %s22
      %28 = dma.hbm_to_vmem [thread:$0]  %s3, 4096, %s23, [#allocation3], 512, 512, 32
    $region17: #{_lambda_.3} parent=1 // pred_fallthru
      _
    // Predicated region
    $region18: #{_lambda_.3} parent=1 // pred_check
      _
    $region19: #{_lambda_.3} parent=1 // pred_check_branch
      %30 = sbr.rel (0) target = $region21
    $region20: #{_lambda_.3} parent=1 // pred_region
      _
    $region21: #{_lambda_.3} parent=1 // pred_fallthru
      _
    // Predicated region
    $region22: #{_lambda_.3} parent=1 // pred_check
      _
    $region23: #{_lambda_.3} parent=1 // pred_check_branch
      %32 = sbr.rel (0) target = $region25
    $region24: #{_lambda_.3} parent=1 // pred_region
      %33 = dma.done [#allocation3], 4096
    $region25: #{_lambda_.3} parent=1 // pred_fallthru
      _
    %v34 = vld [vmem:[%s0] sm:$0xff]
    %v35 = vld [vmem:[%s0 + $0x8] sm:$0xff]
    %v36 = vld [vmem:[%s1] sm:$0xff]
    %v37 = vld [vmem:[%s1 + $0x8] sm:$0xff]
    %v38 = vld [vmem:[%s1 + $0x10] sm:$0xff]
    %v39 = vld [vmem:[%s1 + $0x18] sm:$0xff]
    %v40 = vld [vmem:[%s1 + $0x20] sm:$0xff]
    %v41 = vld [vmem:[%s1 + $0x28] sm:$0xff]
    %v42 = vld [vmem:[%s1 + $0x30] sm:$0xff]
    %v43 = vld [vmem:[%s1 + $0x38] sm:$0xff]
    %v44 = vld [vmem:[%s1 + $0x40] sm:$0xff]
    %v45 = vld [vmem:[%s1 + $0x48] sm:$0xff]
    %v46 = vld [vmem:[%s2] sm:$0x1]
    %v48 = vlaneseq
    %v49 = vshrl.u32 %v48, 7
    %v50 = vsub.s32 0, %v49
    %v51 = vrot.slane %v46, %v50
    %vm53 = vcmask 654336
    %v55 = vsel %vm53, %v34, 0
    %v58 = vsel %vm53, %v35, 0
    %60 = vmatprep.subr.mxu0 0.0
    %61 = vmatpush1.msra.mxu0 %v36
    %62 = vmatprep.subr.mxu0 0.0
    %63 = vmatpush1.msra.mxu0 %v37
    %64 = vmatprep.subr.mxu0 0.0
    %65 = vmatpush1.msra.mxu0 %v38
    %66 = vmatprep.subr.mxu0 0.0
    %67 = vmatpush1.msra.mxu0 %v39
    %68 = vmatprep.subr.mxu0 0.0
    %69 = vmatpush1.msra.mxu0 %v40
    %70 = vmatprep.subr.mxu0 0.0
    %71 = vmatpush1.msra.mxu0 %v41
    %72 = vmatprep.subr.mxu0 0.0
    %73 = vmatpush1.msra.mxu0 %v42
    %74 = vmatprep.subr.mxu0 0.0
    %75 = vmatpush1.msra.mxu0 %v43
    %76 = vmatprep.subr.mxu0 0.0
    %77 = vmatpush1.msra.mxu0 %v44
    %78 = vmatprep.subr.mxu0 0.0
    %79 = vmatpush1.msra.mxu0 %v45
    %80 = vmatprep.subr.mxu0 0.0
    %81 = vmatpush1.msra.mxu0 0.0
    %82 = vmatprep.subr.mxu0 0.0
    %83 = vmatpush1.msra.mxu0 0.0
    %84 = vmatprep.subr.mxu0 0.0
    %85 = vmatpush1.msra.mxu0 0.0
    %86 = vmatprep.subr.mxu0 0.0
    %87 = vmatpush1.msra.mxu0 0.0
    %88 = vmatprep.subr.mxu0 0.0
    %89 = vmatpush1.msra.mxu0 0.0
    %90 = vmatprep.subr.mxu0 0.0
    %91 = vmatpush1.msra.mxu0 0.0
    %92 = vmatprep.subr.mxu0 0.0
    %93 = vmatpush1.msra.mxu0 0.0
    %94 = vmatprep.subr.mxu0 0.0
    %95 = vmatpush1.msra.mxu0 0.0
    %96 = vmatprep.subr.mxu0 0.0
    %97 = vmatpush1.msra.mxu0 0.0
    %98 = vmatprep.subr.mxu0 0.0
    %99 = vmatpush1.msra.mxu0 0.0
    %100 = vmatprep.subr.mxu0 0.0
    %101 = vmatpush1.msra.mxu0 0.0
    %102 = vmatprep.subr.mxu0 0.0
    %103 = vmatpush1.msra.mxu0 0.0
    %104 = vmatprep.subr.mxu0 0.0
    %105 = vmatpush1.msra.mxu0 0.0
    %106 = vmatprep.subr.mxu0 0.0
    %107 = vmatpush1.msra.mxu0 0.0
    %108 = vmatprep.subr.mxu0 0.0
    %109 = vmatpush1.msra.mxu0 0.0
    %110 = vmatprep.subr.mxu0 0.0
    %111 = vmatpush1.msra.mxu0 0.0
    %112 = vmatprep.subr.mxu0 0.0
    %113 = vmatpush1.msra.mxu0 0.0
    %114 = vmatprep.subr.mxu0 0.0
    %115 = vmatpush1.msra.mxu0 0.0
    %116 = vmatprep.subr.mxu0 0.0
    %117 = vmatpush1.msra.mxu0 0.0
    %118 = vmatprep.subr.mxu0 0.0
    %119 = vmatpush1.msra.mxu0 0.0
    %120 = vmatprep.subr.mxu0 0.0
    %121 = vmatpush1.msra.mxu0 0.0
    %122 = vmatprep.subr.mxu0 0.0
    %123 = vmatpush1.msra.mxu0 0.0
    %124 = vmatprep.mubr.f32.mxu0 0.0
    %125 = vmatmul.mubr.f32.gmra.mrb[0].mxu0 %v55
    %v126 = vpop.f32.mrb[0].mxu0
    %v127 = vadd.f32 %v51, %v126
    %v128 = vpop.f32.mrb[0].mxu0
    %129 = vmatprep.mubr.f32.mxu0 0.0
    %130 = vmatmul.mubr.f32.gmra.mrb[0].mxu0 %v58
    %v131 = vpop.f32.mrb[0].mxu0
    %v132 = vadd.f32 %v51, %v131
    %v133 = vpop.f32.mrb[0].mxu0
    %134 = vdwg.mxu0
    %v135 = vld [vmem:[#allocation2] sm:$0xff]
    %v136 = vld [vmem:[#allocation2 + $0x8] sm:$0xff]
    %v137 = vld [vmem:[#allocation2 + $0x10] sm:$0xff]
    %v138 = vld [vmem:[#allocation2 + $0x18] sm:$0xff]
    %v139 = vld [vmem:[#allocation2 + $0x20] sm:$0xff]
    %v140 = vld [vmem:[#allocation2 + $0x28] sm:$0xff]
    %v141 = vld [vmem:[#allocation2 + $0x30] sm:$0xff]
    %v142 = vld [vmem:[#allocation2 + $0x38] sm:$0xff]
    %v143 = vld [vmem:[#allocation2 + $0x40] sm:$0xff]
    %v144 = vld [vmem:[#allocation2 + $0x48] sm:$0xff]
    %v145 = vld [vmem:[#allocation2 + $0x50] sm:$0xff]
    %v146 = vld [vmem:[#allocation2 + $0x58] sm:$0xff]
    %v147 = vld [vmem:[#allocation2 + $0x60] sm:$0xff]
    %v148 = vld [vmem:[#allocation2 + $0x68] sm:$0xff]
    %v149 = vld [vmem:[#allocation2 + $0x70] sm:$0xff]
    %v150 = vld [vmem:[#allocation2 + $0x78] sm:$0xff]
    %v151 = vld [vmem:[#allocation2 + $0x80] sm:$0xff]
    %v152 = vld [vmem:[#allocation2 + $0x88] sm:$0xff]
    %v153 = vld [vmem:[#allocation2 + $0x90] sm:$0xff]
    %v154 = vld [vmem:[#allocation2 + $0x98] sm:$0xff]
    %v155 = vld [vmem:[#allocation2 + $0xa0] sm:$0xff]
    %v156 = vld [vmem:[#allocation2 + $0xa8] sm:$0xff]
    %v157 = vld [vmem:[#allocation2 + $0xb0] sm:$0xff]
    %v158 = vld [vmem:[#allocation2 + $0xb8] sm:$0xff]
    %v159 = vld [vmem:[#allocation2 + $0xc0] sm:$0xff]
    %v160 = vld [vmem:[#allocation2 + $0xc8] sm:$0xff]
    %v161 = vld [vmem:[#allocation2 + $0xd0] sm:$0xff]
    %v162 = vld [vmem:[#allocation2 + $0xd8] sm:$0xff]
    %v163 = vld [vmem:[#allocation2 + $0xe0] sm:$0xff]
    %v164 = vld [vmem:[#allocation2 + $0xe8] sm:$0xff]
    %v165 = vld [vmem:[#allocation2 + $0xf0] sm:$0xff]
    %v166 = vld [vmem:[#allocation2 + $0xf8] sm:$0xff]
    %v167 = vld [vmem:[%s4] sm:$0xf]
    %v169 = vlaneseq
    %v170 = vshrl.u32 %v169, 7
    %v171 = vsub.s32 0, %v170
    %v172 = vrot.slane %v167, %v171
    %v173 = vlaneseq
    %v174 = vshrl.u32 %v173, 7
    %v175 = vsub.s32 1, %v174
    %v176 = vrot.slane %v167, %v175
    %v177 = vlaneseq
    %v178 = vshrl.u32 %v177, 7
    %v179 = vsub.s32 2, %v178
    %v180 = vrot.slane %v167, %v179
    %v181 = vlaneseq
    %v182 = vshrl.u32 %v181, 7
    %v183 = vsub.s32 3, %v182
    %v184 = vrot.slane %v167, %v183
    %vm189 = vcmask 523264
    %v191 = vsel %vm189, %v127, 0
    %v194 = vsel %vm189, %v132, 0
    %196 = vmatprep.subr.mxu0 %v136
    %197 = vmatpush1.msra.mxu0 %v135
    %198 = vmatprep.subr.mxu0 %v140
    %199 = vmatpush1.msra.mxu0 %v139
    %200 = vmatprep.subr.mxu0 %v144
    %201 = vmatpush1.msra.mxu0 %v143
    %202 = vmatprep.subr.mxu0 %v148
    %203 = vmatpush1.msra.mxu0 %v147
    %204 = vmatprep.subr.mxu0 %v152
    %205 = vmatpush1.msra.mxu0 %v151
    %206 = vmatprep.subr.mxu0 %v156
    %207 = vmatpush1.msra.mxu0 %v155
    %208 = vmatprep.subr.mxu0 %v160
    %209 = vmatpush1.msra.mxu0 %v159
    %210 = vmatprep.subr.mxu0 %v164
    %211 = vmatpush1.msra.mxu0 %v163
    %212 = vmatprep.subr.mxu0 0.0
    %213 = vmatpush1.msra.mxu0 0.0
    %214 = vmatprep.subr.mxu0 0.0
    %215 = vmatpush1.msra.mxu0 0.0
    %216 = vmatprep.subr.mxu0 0.0
    %217 = vmatpush1.msra.mxu0 0.0
    %218 = vmatprep.subr.mxu0 0.0
    %219 = vmatpush1.msra.mxu0 0.0
    %220 = vmatprep.subr.mxu0 0.0
    %221 = vmatpush1.msra.mxu0 0.0
    %222 = vmatprep.subr.mxu0 0.0
    %223 = vmatpush1.msra.mxu0 0.0
    %224 = vmatprep.subr.mxu0 0.0
    %225 = vmatpush1.msra.mxu0 0.0
    %226 = vmatprep.subr.mxu0 0.0
    %227 = vmatpush1.msra.mxu0 0.0
    %228 = vmatprep.subr.mxu0 0.0
    %229 = vmatpush1.msra.mxu0 0.0
    %230 = vmatprep.subr.mxu0 0.0
    %231 = vmatpush1.msra.mxu0 0.0
    %232 = vmatprep.subr.mxu0 0.0
    %233 = vmatpush1.msra.mxu0 0.0
    %234 = vmatprep.subr.mxu0 0.0
    %235 = vmatpush1.msra.mxu0 0.0
    %236 = vmatprep.subr.mxu0 0.0
    %237 = vmatpush1.msra.mxu0 0.0
    %238 = vmatprep.subr.mxu0 0.0
    %239 = vmatpush1.msra.mxu0 0.0
    %240 = vmatprep.subr.mxu0 0.0
    %241 = vmatpush1.msra.mxu0 0.0
    %242 = vmatprep.subr.mxu0 0.0
    %243 = vmatpush1.msra.mxu0 0.0
    %244 = vmatprep.subr.mxu0 0.0
    %245 = vmatpush1.msra.mxu0 0.0
    %246 = vmatprep.subr.mxu0 0.0
    %247 = vmatpush1.msra.mxu0 0.0
    %248 = vmatprep.subr.mxu0 0.0
    %249 = vmatpush1.msra.mxu0 0.0
    %250 = vmatprep.subr.mxu0 0.0
    %251 = vmatpush1.msra.mxu0 0.0
    %252 = vmatprep.subr.mxu0 0.0
    %253 = vmatpush1.msra.mxu0 0.0
    %254 = vmatprep.subr.mxu0 0.0
    %255 = vmatpush1.msra.mxu0 0.0
    %256 = vmatprep.subr.mxu0 0.0
    %257 = vmatpush1.msra.mxu0 0.0
    %258 = vmatprep.subr.mxu0 0.0
    %259 = vmatpush1.msra.mxu0 0.0
    %260 = vmatprep.mubr.f32.mxu0 0.0
    %261 = vmatmul.mubr.f32.gmra.mrb[0].mxu0 %v191
    %v262 = vpop.f32.mrb[0].mxu0
    %v263 = vadd.f32 %v172, %v262
    %v264 = vpop.f32.mrb[0].mxu0
    %v265 = vadd.f32 %v176, %v264
    %266 = vmatprep.mubr.f32.mxu0 0.0
    %267 = vmatmul.mubr.f32.gmra.mrb[0].mxu0 %v194
    %v268 = vpop.f32.mrb[0].mxu0
    %v269 = vadd.f32 %v172, %v268
    %v270 = vpop.f32.mrb[0].mxu0
    %v271 = vadd.f32 %v176, %v270
    %272 = vdwg.mxu0
    %273 = vmatprep.subr.mxu0 %v138
    %274 = vmatpush1.msra.mxu0 %v137
    %275 = vmatprep.subr.mxu0 %v142
    %276 = vmatpush1.msra.mxu0 %v141
    %277 = vmatprep.subr.mxu0 %v146
    %278 = vmatpush1.msra.mxu0 %v145
    %279 = vmatprep.subr.mxu0 %v150
    %280 = vmatpush1.msra.mxu0 %v149
    %281 = vmatprep.subr.mxu0 %v154
    %282 = vmatpush1.msra.mxu0 %v153
    %283 = vmatprep.subr.mxu0 %v158
    %284 = vmatpush1.msra.mxu0 %v157
    %285 = vmatprep.subr.mxu0 %v162
    %286 = vmatpush1.msra.mxu0 %v161
    %287 = vmatprep.subr.mxu0 %v166
    %288 = vmatpush1.msra.mxu0 %v165
    %289 = vmatprep.subr.mxu0 0.0
    %290 = vmatpush1.msra.mxu0 0.0
    %291 = vmatprep.subr.mxu0 0.0
    %292 = vmatpush1.msra.mxu0 0.0
    %293 = vmatprep.subr.mxu0 0.0
    %294 = vmatpush1.msra.mxu0 0.0
    %295 = vmatprep.subr.mxu0 0.0
    %296 = vmatpush1.msra.mxu0 0.0
    %297 = vmatprep.subr.mxu0 0.0
    %298 = vmatpush1.msra.mxu0 0.0
    %299 = vmatprep.subr.mxu0 0.0
    %300 = vmatpush1.msra.mxu0 0.0
    %301 = vmatprep.subr.mxu0 0.0
    %302 = vmatpush1.msra.mxu0 0.0
    %303 = vmatprep.subr.mxu0 0.0
    %304 = vmatpush1.msra.mxu0 0.0
    %305 = vmatprep.subr.mxu0 0.0
    %306 = vmatpush1.msra.mxu0 0.0
    %307 = vmatprep.subr.mxu0 0.0
    %308 = vmatpush1.msra.mxu0 0.0
    %309 = vmatprep.subr.mxu0 0.0
    %310 = vmatpush1.msra.mxu0 0.0
    %311 = vmatprep.subr.mxu0 0.0
    %312 = vmatpush1.msra.mxu0 0.0
    %313 = vmatprep.subr.mxu0 0.0
    %314 = vmatpush1.msra.mxu0 0.0
    %315 = vmatprep.subr.mxu0 0.0
    %316 = vmatpush1.msra.mxu0 0.0
    %317 = vmatprep.subr.mxu0 0.0
    %318 = vmatpush1.msra.mxu0 0.0
    %319 = vmatprep.subr.mxu0 0.0
    %320 = vmatpush1.msra.mxu0 0.0
    %321 = vmatprep.subr.mxu0 0.0
    %322 = vmatpush1.msra.mxu0 0.0
    %323 = vmatprep.subr.mxu0 0.0
    %324 = vmatpush1.msra.mxu0 0.0
    %325 = vmatprep.subr.mxu0 0.0
    %326 = vmatpush1.msra.mxu0 0.0
    %327 = vmatprep.subr.mxu0 0.0
    %328 = vmatpush1.msra.mxu0 0.0
    %329 = vmatprep.subr.mxu0 0.0
    %330 = vmatpush1.msra.mxu0 0.0
    %331 = vmatprep.subr.mxu0 0.0
    %332 = vmatpush1.msra.mxu0 0.0
    %333 = vmatprep.subr.mxu0 0.0
    %334 = vmatpush1.msra.mxu0 0.0
    %335 = vmatprep.subr.mxu0 0.0
    %336 = vmatpush1.msra.mxu0 0.0
    %337 = vmatprep.mubr.f32.mxu0 0.0
    %338 = vmatmul.mubr.f32.gmra.mrb[0].mxu0 %v191
    %v339 = vpop.f32.mrb[0].mxu0
    %v340 = vadd.f32 %v180, %v339
    %v341 = vpop.f32.mrb[0].mxu0
    %v342 = vadd.f32 %v184, %v341
    %343 = vmatprep.mubr.f32.mxu0 0.0
    %344 = vmatmul.mubr.f32.gmra.mrb[0].mxu0 %v194
    %v345 = vpop.f32.mrb[0].mxu0
    %v346 = vadd.f32 %v180, %v345
    %v347 = vpop.f32.mrb[0].mxu0
    %v348 = vadd.f32 %v184, %v347
    %349 = vdwg.mxu0
    %350 = vst [vmem:[%s5] sm:$0xff] %v263
    %351 = vst [vmem:[%s5 + $0x8] sm:$0xff] %v265
    %352 = vst [vmem:[%s5 + $0x10] sm:$0xff] %v269
    %353 = vst [vmem:[%s5 + $0x18] sm:$0xff] %v271
    %s354 = scalar_lea.vmem %s5, 32
    %355 = vst [vmem:[%s354] sm:$0xff] %v340
    %356 = vst [vmem:[%s354 + $0x8] sm:$0xff] %v342
    %357 = vst [vmem:[%s354 + $0x10] sm:$0xff] %v346
    %358 = vst [vmem:[%s354 + $0x18] sm:$0xff] %v348
    // Predicated region
    $region26: #{_lambda_.3} parent=1 // pred_check
      _
    $region27: #{_lambda_.3} parent=1 // pred_check_branch
      %360 = sbr.rel (0) target = $region29
    $region28: #{_lambda_.3} parent=1 // pred_region
      _
    $region29: #{_lambda_.3} parent=1 // pred_fallthru
      _
    // Predicated region
    $region30: #{_lambda_.3} parent=1 // pred_check
      _
    $region31: #{_lambda_.3} parent=1 // pred_check_branch
      %362 = sbr.rel (0) target = $region33
    $region32: #{_lambda_.3} parent=1 // pred_region
      _
    $region33: #{_lambda_.3} parent=1 // pred_fallthru
      _
    %363 = vsyncpa [#allocation3], 1

// kernel: _lambda_.5
$region0: #{_lambda_.5}
  #allocation0 [shape = 'u32[]', space=smem, size = 0x4, offset = 0x4, fixed_abs, tag = 'smem constant byte address 0x4 - core index']
  #allocation1 [shape = 'u32[144,128]{1,0:T(1,128)}', space=vmem, size = 0x12000, scoped, tag = 'internal scratch']
  %s0 = inlined_call_operand.vmem [shape: f32[2,16,64], index: 0, kind: input, shape index: {}]
  %s1 = inlined_call_operand.vmem [shape: f32[64,128], index: 1, kind: input, shape index: {}]
  %s2 = inlined_call_operand.vmem [shape: f32[64,128], index: 2, kind: input, shape index: {}]
  %s3 = inlined_call_operand.vmem [shape: f32[1,128], index: 3, kind: input, shape index: {}]
  %s4 = inlined_call_operand.vmem [shape: f32[1,128], index: 4, kind: input, shape index: {}]
  %s5 = inlined_call_operand.vmem [shape: f32[1,128], index: 5, kind: input, shape index: {}]
  %s6 = inlined_call_operand.vmem [shape: f32[128,128], index: 6, kind: input, shape index: {}]
  %s7 = inlined_call_operand.vmem [shape: f32[1,128], index: 7, kind: input, shape index: {}]
  %s8 = inlined_call_operand.vmem [shape: f32[16,128], index: 8, kind: output, shape index: {}]
  %s9 = sld [smem:[#allocation0]]
  $region42: #{_lambda_.5} parent=0
    _
  %s11 = ssub.s32 1, %s9
  %s12 = scalar_select 0, %s11, %s9
  // Predicated region
  $region2: #{_lambda_.5} parent=0 // pred_check
    _
  $region3: #{_lambda_.5} parent=0 // pred_check_branch
    %14 = sbr.rel (0) target = $region5
  $region4: #{_lambda_.5} parent=0 // pred_region
    _
  $region5: #{_lambda_.5} parent=0 // pred_fallthru
    _
  // Predicated region
  $region6: #{_lambda_.5} parent=0 // pred_check
    _
  $region7: #{_lambda_.5} parent=0 // pred_check_branch
    %16 = sbr.rel (0) target = $region9
  $region8: #{_lambda_.5} parent=0 // pred_region
    _
  $region9: #{_lambda_.5} parent=0 // pred_fallthru
    _
  // Predicated region
  $region10: #{_lambda_.5} parent=0 // pred_check
    _
  $region11: #{_lambda_.5} parent=0 // pred_check_branch
    %18 = sbr.rel (0) target = $region13
  $region12: #{_lambda_.5} parent=0 // pred_region
    _
  $region13: #{_lambda_.5} parent=0 // pred_fallthru
    _
  // Predicated region
  $region14: #{_lambda_.5} parent=0 // pred_check
    _
  $region15: #{_lambda_.5} parent=0 // pred_check_branch
    %20 = sbr.rel (0) target = $region17
  $region16: #{_lambda_.5} parent=0 // pred_region
    _
  $region17: #{_lambda_.5} parent=0 // pred_fallthru
    _
  // Predicated region
  $region18: #{_lambda_.5} parent=0 // pred_check
    _
  $region19: #{_lambda_.5} parent=0 // pred_check_branch
    %22 = sbr.rel (0) target = $region21
  $region20: #{_lambda_.5} parent=0 // pred_region
    _
  $region21: #{_lambda_.5} parent=0 // pred_fallthru
    _
  // Predicated region
  $region22: #{_lambda_.5} parent=0 // pred_check
    _
  $region23: #{_lambda_.5} parent=0 // pred_check_branch
    %24 = sbr.rel (0) target = $region25
  $region24: #{_lambda_.5} parent=0 // pred_region
    _
  $region25: #{_lambda_.5} parent=0 // pred_fallthru
    _
  // Predicated region
  $region26: #{_lambda_.5} parent=0 // pred_check
    _
  $region27: #{_lambda_.5} parent=0 // pred_check_branch
    %26 = sbr.rel (0) target = $region29
  $region28: #{_lambda_.5} parent=0 // pred_region
    _
  $region29: #{_lambda_.5} parent=0 // pred_fallthru
    _
  // Predicated region
  $region30: #{_lambda_.5} parent=0 // pred_check
    _
  $region31: #{_lambda_.5} parent=0 // pred_check_branch
    %28 = sbr.rel (0) target = $region33
  $region32: #{_lambda_.5} parent=0 // pred_region
    _
  $region33: #{_lambda_.5} parent=0 // pred_fallthru
    _
  %v29 = vld [vmem:[%s0] sm:$0xff]
  %v30 = vld [vmem:[%s0 + $0x8] sm:$0xff]
  %v31 = vld [vmem:[%s1] sm:$0xff]
  %v32 = vld [vmem:[%s1 + $0x8] sm:$0xff]
  %v33 = vld [vmem:[%s1 + $0x10] sm:$0xff]
  %v34 = vld [vmem:[%s1 + $0x18] sm:$0xff]
  %v35 = vld [vmem:[%s1 + $0x20] sm:$0xff]
  %v36 = vld [vmem:[%s1 + $0x28] sm:$0xff]
  %v37 = vld [vmem:[%s1 + $0x30] sm:$0xff]
  %v38 = vld [vmem:[%s1 + $0x38] sm:$0xff]
  %s39 = scalar_lea.vmem %s0, 16
  %v40 = vld [vmem:[%s39] sm:$0xff]
  %v41 = vld [vmem:[%s39 + $0x8] sm:$0xff]
  %v42 = vld [vmem:[%s2] sm:$0xff]
  %v43 = vld [vmem:[%s2 + $0x8] sm:$0xff]
  %v44 = vld [vmem:[%s2 + $0x10] sm:$0xff]
  %v45 = vld [vmem:[%s2 + $0x18] sm:$0xff]
  %v46 = vld [vmem:[%s2 + $0x20] sm:$0xff]
  %v47 = vld [vmem:[%s2 + $0x28] sm:$0xff]
  %v48 = vld [vmem:[%s2 + $0x30] sm:$0xff]
  %v49 = vld [vmem:[%s2 + $0x38] sm:$0xff]
  %vm50 = vcmask 523264
  %v52 = vsel %vm50, %v40, 0
  %v55 = vsel %vm50, %v41, 0
  %57 = vmatprep.subr.mxu0 0.0
  %58 = vmatpush1.msra.mxu0 %v42
  %59 = vmatprep.subr.mxu0 0.0
  %60 = vmatpush1.msra.mxu0 %v43
  %61 = vmatprep.subr.mxu0 0.0
  %62 = vmatpush1.msra.mxu0 %v44
  %63 = vmatprep.subr.mxu0 0.0
  %64 = vmatpush1.msra.mxu0 %v45
  %65 = vmatprep.subr.mxu0 0.0
  %66 = vmatpush1.msra.mxu0 %v46
  %67 = vmatprep.subr.mxu0 0.0
  %68 = vmatpush1.msra.mxu0 %v47
  %69 = vmatprep.subr.mxu0 0.0
  %70 = vmatpush1.msra.mxu0 %v48
  %71 = vmatprep.subr.mxu0 0.0
  %72 = vmatpush1.msra.mxu0 %v49
  %73 = vmatprep.subr.mxu0 0.0
  %74 = vmatpush1.msra.mxu0 0.0
  %75 = vmatprep.subr.mxu0 0.0
  %76 = vmatpush1.msra.mxu0 0.0
  %77 = vmatprep.subr.mxu0 0.0
  %78 = vmatpush1.msra.mxu0 0.0
  %79 = vmatprep.subr.mxu0 0.0
  %80 = vmatpush1.msra.mxu0 0.0
  %81 = vmatprep.subr.mxu0 0.0
  %82 = vmatpush1.msra.mxu0 0.0
  %83 = vmatprep.subr.mxu0 0.0
  %84 = vmatpush1.msra.mxu0 0.0
  %85 = vmatprep.subr.mxu0 0.0
  %86 = vmatpush1.msra.mxu0 0.0
  %87 = vmatprep.subr.mxu0 0.0
  %88 = vmatpush1.msra.mxu0 0.0
  %89 = vmatprep.subr.mxu0 0.0
  %90 = vmatpush1.msra.mxu0 0.0
  %91 = vmatprep.subr.mxu0 0.0
  %92 = vmatpush1.msra.mxu0 0.0
  %93 = vmatprep.subr.mxu0 0.0
  %94 = vmatpush1.msra.mxu0 0.0
  %95 = vmatprep.subr.mxu0 0.0
  %96 = vmatpush1.msra.mxu0 0.0
  %97 = vmatprep.subr.mxu0 0.0
  %98 = vmatpush1.msra.mxu0 0.0
  %99 = vmatprep.subr.mxu0 0.0
  %100 = vmatpush1.msra.mxu0 0.0
  %101 = vmatprep.subr.mxu0 0.0
  %102 = vmatpush1.msra.mxu0 0.0
  %103 = vmatprep.subr.mxu0 0.0
  %104 = vmatpush1.msra.mxu0 0.0
  %105 = vmatprep.subr.mxu0 0.0
  %106 = vmatpush1.msra.mxu0 0.0
  %107 = vmatprep.subr.mxu0 0.0
  %108 = vmatpush1.msra.mxu0 0.0
  %109 = vmatprep.subr.mxu0 0.0
  %110 = vmatpush1.msra.mxu0 0.0
  %111 = vmatprep.subr.mxu0 0.0
  %112 = vmatpush1.msra.mxu0 0.0
  %113 = vmatprep.subr.mxu0 0.0
  %114 = vmatpush1.msra.mxu0 0.0
  %115 = vmatprep.subr.mxu0 0.0
  %116 = vmatpush1.msra.mxu0 0.0
  %117 = vmatprep.subr.mxu0 0.0
  %118 = vmatpush1.msra.mxu0 0.0
  %119 = vmatprep.subr.mxu0 0.0
  %120 = vmatpush1.msra.mxu0 0.0
  %121 = vmatprep.mubr.f32.mxu0 0.0
  %122 = vmatmul.mubr.f32.gmra.mrb[0].mxu0 %v52
  %v123 = vpop.f32.mrb[0].mxu0
  %v124 = vadd.f32 0.0, %v123
  %v125 = vpop.f32.mrb[0].mxu0
  %126 = vmatprep.mubr.f32.mxu0 0.0
  %127 = vmatmul.mubr.f32.gmra.mrb[0].mxu0 %v55
  %v128 = vpop.f32.mrb[0].mxu0
  %v129 = vadd.f32 0.0, %v128
  %v130 = vpop.f32.mrb[0].mxu0
  %131 = vdwg.mxu0
  %v133 = vsel %vm50, %v29, 0
  %v136 = vsel %vm50, %v30, 0
  %138 = vmatprep.subr.mxu0 0.0
  %139 = vmatpush1.msra.mxu0 %v31
  %140 = vmatprep.subr.mxu0 0.0
  %141 = vmatpush1.msra.mxu0 %v32
  %142 = vmatprep.subr.mxu0 0.0
  %143 = vmatpush1.msra.mxu0 %v33
  %144 = vmatprep.subr.mxu0 0.0
  %145 = vmatpush1.msra.mxu0 %v34
  %146 = vmatprep.subr.mxu0 0.0
  %147 = vmatpush1.msra.mxu0 %v35
  %148 = vmatprep.subr.mxu0 0.0
  %149 = vmatpush1.msra.mxu0 %v36
  %150 = vmatprep.subr.mxu0 0.0
  %151 = vmatpush1.msra.mxu0 %v37
  %152 = vmatprep.subr.mxu0 0.0
  %153 = vmatpush1.msra.mxu0 %v38
  %154 = vmatprep.subr.mxu0 0.0
  %155 = vmatpush1.msra.mxu0 0.0
  %156 = vmatprep.subr.mxu0 0.0
  %157 = vmatpush1.msra.mxu0 0.0
  %158 = vmatprep.subr.mxu0 0.0
  %159 = vmatpush1.msra.mxu0 0.0
  %160 = vmatprep.subr.mxu0 0.0
  %161 = vmatpush1.msra.mxu0 0.0
  %162 = vmatprep.subr.mxu0 0.0
  %163 = vmatpush1.msra.mxu0 0.0
  %164 = vmatprep.subr.mxu0 0.0
  %165 = vmatpush1.msra.mxu0 0.0
  %166 = vmatprep.subr.mxu0 0.0
  %167 = vmatpush1.msra.mxu0 0.0
  %168 = vmatprep.subr.mxu0 0.0
  %169 = vmatpush1.msra.mxu0 0.0
  %170 = vmatprep.subr.mxu0 0.0
  %171 = vmatpush1.msra.mxu0 0.0
  %172 = vmatprep.subr.mxu0 0.0
  %173 = vmatpush1.msra.mxu0 0.0
  %174 = vmatprep.subr.mxu0 0.0
  %175 = vmatpush1.msra.mxu0 0.0
  %176 = vmatprep.subr.mxu0 0.0
  %177 = vmatpush1.msra.mxu0 0.0
  %178 = vmatprep.subr.mxu0 0.0
  %179 = vmatpush1.msra.mxu0 0.0
  %180 = vmatprep.subr.mxu0 0.0
  %181 = vmatpush1.msra.mxu0 0.0
  %182 = vmatprep.subr.mxu0 0.0
  %183 = vmatpush1.msra.mxu0 0.0
  %184 = vmatprep.subr.mxu0 0.0
  %185 = vmatpush1.msra.mxu0 0.0
  %186 = vmatprep.subr.mxu0 0.0
  %187 = vmatpush1.msra.mxu0 0.0
  %188 = vmatprep.subr.mxu0 0.0
  %189 = vmatpush1.msra.mxu0 0.0
  %190 = vmatprep.subr.mxu0 0.0
  %191 = vmatpush1.msra.mxu0 0.0
  %192 = vmatprep.subr.mxu0 0.0
  %193 = vmatpush1.msra.mxu0 0.0
  %194 = vmatprep.subr.mxu0 0.0
  %195 = vmatpush1.msra.mxu0 0.0
  %196 = vmatprep.subr.mxu0 0.0
  %197 = vmatpush1.msra.mxu0 0.0
  %198 = vmatprep.subr.mxu0 0.0
  %199 = vmatpush1.msra.mxu0 0.0
  %200 = vmatprep.subr.mxu0 0.0
  %201 = vmatpush1.msra.mxu0 0.0
  %202 = vmatprep.mubr.f32.mxu0 0.0
  %203 = vmatmul.mubr.f32.gmra.mrb[0].mxu0 %v133
  %v204 = vpop.f32.mrb[0].mxu0
  %v205 = vadd.f32 %v124, %v204
  %v206 = vpop.f32.mrb[0].mxu0
  %207 = vmatprep.mubr.f32.mxu0 0.0
  %208 = vmatmul.mubr.f32.gmra.mrb[0].mxu0 %v136
  %v209 = vpop.f32.mrb[0].mxu0
  %v210 = vadd.f32 %v129, %v209
  %v211 = vpop.f32.mrb[0].mxu0
  %212 = vdwg.mxu0
  %v213 = vld [vmem:[%s3] sm:$0x1]
  %v215 = vlaneseq
  %v216 = vshrl.u32 %v215, 7
  %v217 = vsub.s32 0, %v216
  %v218 = vrot.slane %v213, %v217
  %v220 = vadd.f32 %v205, %v218
  %v221 = vadd.f32 %v210, %v218
  %v222 = vmax.f32 %v220, 0.0
  %v223 = vmax.f32 %v221, 0.0
  %224 = vadd.xlane.f32.xlu0 %v222
  %v225 = vpop.xlane.xlu0 %224
  %226 = vadd.xlane.f32.xlu0 %v223
  %v227 = vpop.xlane.xlu0 %226
  %v228 = vrcp.pop 128.0
  %v229 = vmul.f32 %v225, %v228
  %v230 = vmul.f32 %v227, %v228
  %v231 = vsub.f32 %v222, %v229
  %v232 = vsub.f32 %v223, %v230
  %v233 = vmul.f32 %v231, %v231
  %v234 = vmul.f32 %v232, %v232
  %235 = vadd.xlane.f32.xlu0 %v233
  %v236 = vpop.xlane.xlu0 %235
  %237 = vadd.xlane.f32.xlu0 %v234
  %v238 = vpop.xlane.xlu0 %237
  %v239 = vmul.f32 %v236, %v228
  %v240 = vmul.f32 %v238, %v228
  %v241 = vadd.f32 %v239, 1e-05
  %v242 = vadd.f32 %v240, 1e-05
  %v243 = vrsqrt.pop %v241
  %v244 = vrsqrt.pop %v242
  %v245 = vmul.f32 %v231, %v243
  %v246 = vmul.f32 %v232, %v244
  %v247 = vld [vmem:[%s4] sm:$0x1]
  %v249 = vlaneseq
  %v250 = vshrl.u32 %v249, 7
  %v251 = vsub.s32 0, %v250
  %v252 = vrot.slane %v247, %v251
  %v254 = vmul.f32 %v245, %v252
  %v255 = vmul.f32 %v246, %v252
  %v256 = vld [vmem:[%s5] sm:$0x1]
  %v258 = vlaneseq
  %v259 = vshrl.u32 %v258, 7
  %v260 = vsub.s32 0, %v259
  %v261 = vrot.slane %v256, %v260
  %v263 = vadd.f32 %v254, %v261
  %v264 = vadd.f32 %v255, %v261
  %v265 = vld [vmem:[%s6] sm:$0xff]
  %v266 = vld [vmem:[%s6 + $0x8] sm:$0xff]
  %v267 = vld [vmem:[%s6 + $0x10] sm:$0xff]
  %v268 = vld [vmem:[%s6 + $0x18] sm:$0xff]
  %v269 = vld [vmem:[%s6 + $0x20] sm:$0xff]
  %v270 = vld [vmem:[%s6 + $0x28] sm:$0xff]
  %v271 = vld [vmem:[%s6 + $0x30] sm:$0xff]
  %v272 = vld [vmem:[%s6 + $0x38] sm:$0xff]
  %v273 = vld [vmem:[%s6 + $0x40] sm:$0xff]
  %v274 = vld [vmem:[%s6 + $0x48] sm:$0xff]
  %v275 = vld [vmem:[%s6 + $0x50] sm:$0xff]
  %v276 = vld [vmem:[%s6 + $0x58] sm:$0xff]
  %v277 = vld [vmem:[%s6 + $0x60] sm:$0xff]
  %v278 = vld [vmem:[%s6 + $0x68] sm:$0xff]
  %v279 = vld [vmem:[%s6 + $0x70] sm:$0xff]
  %v280 = vld [vmem:[%s6 + $0x78] sm:$0xff]
  %v281 = vld [vmem:[%s7] sm:$0x1]
  %v283 = vlaneseq
  %v284 = vshrl.u32 %v283, 7
  %v285 = vsub.s32 0, %v284
  %v286 = vrot.slane %v281, %v285
  %288 = vmatprep.subr.mxu0 0.0
  %289 = vmatpush1.msra.mxu0 %v265
  %290 = vmatprep.subr.mxu0 0.0
  %291 = vmatpush1.msra.mxu0 %v266
  %292 = vmatprep.subr.mxu0 0.0
  %293 = vmatpush1.msra.mxu0 %v267
  %294 = vmatprep.subr.mxu0 0.0
  %295 = vmatpush1.msra.mxu0 %v268
  %296 = vmatprep.subr.mxu0 0.0
  %297 = vmatpush1.msra.mxu0 %v269
  %298 = vmatprep.subr.mxu0 0.0
  %299 = vmatpush1.msra.mxu0 %v270
  %300 = vmatprep.subr.mxu0 0.0
  %301 = vmatpush1.msra.mxu0 %v271
  %302 = vmatprep.subr.mxu0 0.0
  %303 = vmatpush1.msra.mxu0 %v272
  %304 = vmatprep.subr.mxu0 0.0
  %305 = vmatpush1.msra.mxu0 %v273
  %306 = vmatprep.subr.mxu0 0.0
  %307 = vmatpush1.msra.mxu0 %v274
  %308 = vmatprep.subr.mxu0 0.0
  %309 = vmatpush1.msra.mxu0 %v275
  %310 = vmatprep.subr.mxu0 0.0
  %311 = vmatpush1.msra.mxu0 %v276
  %312 = vmatprep.subr.mxu0 0.0
  %313 = vmatpush1.msra.mxu0 %v277
  %314 = vmatprep.subr.mxu0 0.0
  %315 = vmatpush1.msra.mxu0 %v278
  %316 = vmatprep.subr.mxu0 0.0
  %317 = vmatpush1.msra.mxu0 %v279
  %318 = vmatprep.subr.mxu0 0.0
  %319 = vmatpush1.msra.mxu0 %v280
  %320 = vmatprep.subr.mxu0 0.0
  %321 = vmatpush1.msra.mxu0 0.0
  %322 = vmatprep.subr.mxu0 0.0
  %323 = vmatpush1.msra.mxu0 0.0
  %324 = vmatprep.subr.mxu0 0.0
  %325 = vmatpush1.msra.mxu0 0.0
  %326 = vmatprep.subr.mxu0 0.0
  %327 = vmatpush1.msra.mxu0 0.0
  %328 = vmatprep.subr.mxu0 0.0
  %329 = vmatpush1.msra.mxu0 0.0
  %330 = vmatprep.subr.mxu0 0.0
  %331 = vmatpush1.msra.mxu0 0.0
  %332 = vmatprep.subr.mxu0 0.0
  %333 = vmatpush1.msra.mxu0 0.0
  %334 = vmatprep.subr.mxu0 0.0
  %335 = vmatpush1.msra.mxu0 0.0
  %336 = vmatprep.subr.mxu0 0.0
  %337 = vmatpush1.msra.mxu0 0.0
  %338 = vmatprep.subr.mxu0 0.0
  %339 = vmatpush1.msra.mxu0 0.0
  %340 = vmatprep.subr.mxu0 0.0
  %341 = vmatpush1.msra.mxu0 0.0
  %342 = vmatprep.subr.mxu0 0.0
  %343 = vmatpush1.msra.mxu0 0.0
  %344 = vmatprep.subr.mxu0 0.0
  %345 = vmatpush1.msra.mxu0 0.0
  %346 = vmatprep.subr.mxu0 0.0
  %347 = vmatpush1.msra.mxu0 0.0
  %348 = vmatprep.subr.mxu0 0.0
  %349 = vmatpush1.msra.mxu0 0.0
  %350 = vmatprep.subr.mxu0 0.0
  %351 = vmatpush1.msra.mxu0 0.0
  %352 = vmatprep.mubr.f32.mxu0 0.0
  %353 = vmatmul.mubr.f32.gmra.mrb[0].mxu0 %v263
  %v354 = vpop.f32.mrb[0].mxu0
  %v355 = vadd.f32 %v286, %v354
  %v356 = vpop.f32.mrb[0].mxu0
  %357 = vmatprep.mubr.f32.mxu0 0.0
  %358 = vmatmul.mubr.f32.gmra.mrb[0].mxu0 %v264
  %v359 = vpop.f32.mrb[0].mxu0
  %v360 = vadd.f32 %v286, %v359
  %v361 = vpop.f32.mrb[0].mxu0
  %362 = vdwg.mxu0
  %363 = vst [vmem:[%s8] sm:$0xff] %v355
  %364 = vst [vmem:[%s8 + $0x8] sm:$0xff] %v360
  // Predicated region
  $region34: #{_lambda_.5} parent=0 // pred_check
    _
  $region35: #{_lambda_.5} parent=0 // pred_check_branch
    %366 = sbr.rel (0) target = $region37
  $region36: #{_lambda_.5} parent=0 // pred_region
    _
  $region37: #{_lambda_.5} parent=0 // pred_fallthru
    _
  // Predicated region
  $region38: #{_lambda_.5} parent=0 // pred_check
    _
  $region39: #{_lambda_.5} parent=0 // pred_check_branch
    %368 = sbr.rel (0) target = $region41
  $region40: #{_lambda_.5} parent=0 // pred_region
    _
  $region41: #{_lambda_.5} parent=0 // pred_fallthru
    _

// kernel: _lambda_.4
$region0: #{_lambda_.4}
  #allocation0 [shape = 'u32[]', space=smem, size = 0x4, offset = 0x4, fixed_abs, tag = 'smem constant byte address 0x4 - core index']
  #allocation1 [shape = 'u32[144,128]{1,0:T(1,128)}', space=vmem, size = 0x12000, scoped, tag = 'internal scratch']
  #allocation2 [shape = 'f32[2,64]{1,0:T(2,128)}', space=vmem, size = 0x400, scoped, tag = 'scratch operand']
  #allocation3 [shape = 'f32[2,64]{1,0:T(2,128)}', space=vmem, size = 0x400, scoped, tag = 'scratch operand']
  %s0 = inlined_call_operand.vmem [shape: f32[2,8,2,256], index: 0, kind: input, shape index: {}]
  %s1 = inlined_call_operand.vmem [shape: s32[2,1], index: 1, kind: input, shape index: {}]
  %s2 = inlined_call_operand.vmem [shape: f32[2,64,256], index: 2, kind: input, shape index: {}]
  %s3 = inlined_call_operand.vmem [shape: f32[2,8,2,64], index: 3, kind: output, shape index: {}]
  %s4 = sld [smem:[#allocation0]]
  $region56: #{_lambda_.4} parent=0
    _
  %s6 = ssub.s32 1, %s4
  %s7 = scalar_select 0, %s6, %s4
  loop: start=0, step=1, limit=4
  $region2: #{_lambda_.4} parent=0 // loop_pre_header
    _
  $region3: #{_lambda_.4} parent=0 // loop_header
    %s9 = sphi 0, %s13
    %p10 = scmp.ge.s32.totalorder %s9, 4
    %s16 = sphi 0, %s28
    %s17 = sphi 0, %s24
    %s18 = sphi 0, %s16
    %s19 = sphi 0, %s17
    %s20 = sphi 0, %s18
    %s21 = sphi 0, %s19
    %s41 = sphi 0, %s43
    %s44 = sphi 0, %s41
    %s45 = sphi 0, %s44
    %s61 = sphi 0, %s45
    %s65 = sphi 0, %s65
    %s67 = sphi 0, %s65
    %s68 = sphi 0, %s67
    %s82 = sphi 0, %s68
    %s88 = sphi 0, %s90
    %s91 = sphi 0, %s88
    %s92 = sphi 0, %s91
    %s108 = sphi 0, %s92
    %s124 = sphi 0, %s126
    %s127 = sphi 0, %s124
    %s128 = sphi 0, %s127
    %s144 = sphi 0, %s128
  $region4: #{_lambda_.4} parent=0 // loop_header_branch
    %12 = sbr.rel (%p10) target = $region8
  $region5: #{_lambda_.4} parent=0 // loop_body
    %s14 = ssub.s32 %s9, 1
    %s15 = ssub.s32 %s9, 2
    %s22 = sadd.s32 1, %s17
    %p23 = scmp.ge.s32.totalorder %s22, 1
    %s24 = scalar_select %p23, 0, %s22
    %s25 = sadd.s32 1, %s16
    %s26 = scalar_select %p23, %s25, %s16
    %p27 = scmp.ge.s32.totalorder %s26, 2
    %s28 = scalar_select %p27, 0, %s26
    %s29 = smul.u32 %s17, 2
    %s30 = ssub.s32 0, %s29
    %s31 = smul.u32 %s16, %s30
    %s32 = sadd.s32 %s17, %s31
    %s33 = smul.u32 %s24, 2
    %s34 = ssub.s32 0, %s33
    %s35 = smul.u32 %s28, %s34
    %s36 = sadd.s32 %s24, %s35
    %s37 = ssub.s32 %s16, %s28
    %s38 = ssub.s32 %s32, %s36
    %s39 = sor.u32 %s37, %s38
    %p40 = scmp.eq.s32.totalorder %s39, 0
    %s42 = sadd.s32 %s41, 1
    %s43 = scalar_select %p40, %s41, %s42
    %p46 = pneg %p40
    %p47 = scmp.eq.s32.totalorder %s9, 1
    %p48 = por %p46, %p47
    %p49 = scmp.ne.s32.totalorder %s41, %s44
    %p50 = scmp.eq.s32.totalorder %s9, 0
    %p51 = por %p49, %p50
    %p52 = scmp.ne.s32.totalorder %s41, %s44
    %p53 = scmp.eq.s32.totalorder %s14, 1
    %p54 = por %p52, %p53
    %p55 = scmp.ne.s32.totalorder %s44, %s45
    %p56 = scmp.eq.s32.totalorder %s14, 0
    %p57 = por %p55, %p56
    %p58 = scmp.ne.s32.totalorder %s44, %s45
    %p59 = scmp.eq.s32.totalorder %s15, 1
    %p60 = por %p58, %p59
    %p62 = scmp.ne.s32.totalorder %s45, %s61
    %p63 = scmp.eq.s32.totalorder %s15, 0
    %p64 = por %p62, %p63
    %s66 = sadd.s32 %s65, 1
    %p69 = scmp.eq.s32.totalorder %s9, 1
    %p70 = scmp.ne.s32.totalorder %s65, %s67
    %p71 = scmp.eq.s32.totalorder %s9, 0
    %p72 = por %p70, %p71
    %p73 = scmp.ne.s32.totalorder %s65, %s67
    %p74 = scmp.eq.s32.totalorder %s14, 1
    %p75 = por %p73, %p74
    %p76 = scmp.ne.s32.totalorder %s67, %s68
    %p77 = scmp.eq.s32.totalorder %s14, 0
    %p78 = por %p76, %p77
    %p79 = scmp.ne.s32.totalorder %s67, %s68
    %p80 = scmp.eq.s32.totalorder %s15, 1
    %p81 = por %p79, %p80
    %p83 = scmp.ne.s32.totalorder %s68, %s82
    %p84 = scmp.eq.s32.totalorder %s15, 0
    %p85 = por %p83, %p84
    %s86 = ssub.s32 %s16, %s28
    %p87 = scmp.eq.s32.totalorder %s86, 0
    %s89 = sadd.s32 %s88, 1
    %s90 = scalar_select %p87, %s88, %s89
    %p93 = pneg %p87
    %p94 = scmp.eq.s32.totalorder %s9, 1
    %p95 = por %p93, %p94
    %p96 = scmp.ne.s32.totalorder %s88, %s91
    %p97 = scmp.eq.s32.totalorder %s9, 0
    %p98 = por %p96, %p97
    %p99 = scmp.ne.s32.totalorder %s88, %s91
    %p100 = scmp.eq.s32.totalorder %s14, 1
    %p101 = por %p99, %p100
    %p102 = scmp.ne.s32.totalorder %s91, %s92
    %p103 = scmp.eq.s32.totalorder %s14, 0
    %p104 = por %p102, %p103
    %p105 = scmp.ne.s32.totalorder %s91, %s92
    %p106 = scmp.eq.s32.totalorder %s15, 1
    %p107 = por %p105, %p106
    %p109 = scmp.ne.s32.totalorder %s92, %s108
    %p110 = scmp.eq.s32.totalorder %s15, 0
    %p111 = por %p109, %p110
    %s112 = smul.u32 %s17, 2
    %s113 = ssub.s32 0, %s112
    %s114 = smul.u32 %s16, %s113
    %s115 = sadd.s32 %s17, %s114
    %s116 = smul.u32 %s24, 2
    %s117 = ssub.s32 0, %s116
    %s118 = smul.u32 %s28, %s117
    %s119 = sadd.s32 %s24, %s118
    %s120 = ssub.s32 %s16, %s28
    %s121 = ssub.s32 %s115, %s119
    %s122 = sor.u32 %s120, %s121
    %p123 = scmp.eq.s32.totalorder %s122, 0
    %s125 = sadd.s32 %s124, 1
    %s126 = scalar_select %p123, %s124, %s125
    %p129 = pneg %p123
    %p130 = scmp.eq.s32.totalorder %s9, 1
    %p131 = por %p129, %p130
    %p132 = scmp.ne.s32.totalorder %s124, %s127
    %p133 = scmp.eq.s32.totalorder %s9, 0
    %p134 = por %p132, %p133
    %p135 = scmp.ne.s32.totalorder %s124, %s127
    %p136 = scmp.eq.s32.totalorder %s14, 1
    %p137 = por %p135, %p136
    %p138 = scmp.ne.s32.totalorder %s127, %s128
    %p139 = scmp.eq.s32.totalorder %s14, 0
    %p140 = por %p138, %p139
    %p141 = scmp.ne.s32.totalorder %s127, %s128
    %p142 = scmp.eq.s32.totalorder %s15, 1
    %p143 = por %p141, %p142
    %p145 = scmp.ne.s32.totalorder %s128, %s144
    %p146 = scmp.eq.s32.totalorder %s15, 0
    %p147 = por %p145, %p146
    %p148 = scmp.le.s32.totalorder 1, %s9
    %p149 = scmp.lt.s32.totalorder %s9, 3
    %p150 = pnand %p148, %p149
    %p151 = pneg %p150
    // Predicated region
    $region9: #{_lambda_.4} parent=5 // pred_check
      _
    $region10: #{_lambda_.4} parent=5 // pred_check_branch
      %153 = sbr.rel (%p150) target = $region12
    $region11: #{_lambda_.4} parent=5 // pred_region
      %s154 = ssub.s32 %s9, 1
      // Predicated region
      $region13: #{_lambda_.4} parent=11 // pred_check
        %p155 = pneg %p78
      $region14: #{_lambda_.4} parent=11 // pred_check_branch
        %157 = sbr.rel (%p155) target = $region16
      $region15: #{_lambda_.4} parent=11 // pred_region
        _
      $region16: #{_lambda_.4} parent=11 // pred_fallthru
        _
    $region12: #{_lambda_.4} parent=5 // pred_fallthru
      _
    %p158 = scmp.lt.s32.totalorder %s9, 2
    // Predicated region
    $region17: #{_lambda_.4} parent=5 // pred_check
      %p159 = pneg %p158
    $region18: #{_lambda_.4} parent=5 // pred_check_branch
      %161 = sbr.rel (%p159) target = $region20
    $region19: #{_lambda_.4} parent=5 // pred_region
      // Predicated region
      $region21: #{_lambda_.4} parent=19 // pred_check
        %p162 = pneg %p51
      $region22: #{_lambda_.4} parent=19 // pred_check_branch
        %164 = sbr.rel (%p162) target = $region24
      $region23: #{_lambda_.4} parent=19 // pred_region
        %s165 = smul.u32 %s17, 2
        %s166 = ssub.s32 0, %s165
        %s167 = smul.u32 %s16, %s166
        %s168 = sadd.s32 %s17, %s167
        %s169 = smul.u32 8, %s168
        %p170 = scmp.lt.s32.totalorder %s16, 1
        %s171 = scalar_select %p170, %s16, 1
        %p172 = scmp.lt.s32.totalorder %s169, 7
        %s173 = scalar_select %p172, %s169, 7
        %s174 = smul.addr %s173, 2
        %s175 = smul.addr %s171, 16
        %s176 = sadd.s32 %s174, %s175
        %s177 = smul.addr %s176, 2
        %s178 = scalar_lea.vmem %s0, %s177
        %s179 = smul.u32 %s17, 2
        %s180 = ssub.s32 0, %s179
        %s181 = smul.u32 %s16, %s180
        %s182 = sadd.s32 %s17, %s181
        %s183 = smul.u32 8, %s182
      $region24: #{_lambda_.4} parent=19 // pred_fallthru
        _
      // Predicated region
      $region25: #{_lambda_.4} parent=19 // pred_check
        %p184 = pneg %p98
      $region26: #{_lambda_.4} parent=19 // pred_check_branch
        %186 = sbr.rel (%p184) target = $region28
      $region27: #{_lambda_.4} parent=19 // pred_region
        %p187 = scmp.lt.s32.totalorder %s16, 1
        %s188 = scalar_select %p187, %s16, 1
        %s189 = smul.addr %s188, 16
        %s190 = smul.addr %s189, 8
        %s191 = scalar_lea.vmem %s2, %s190
      $region28: #{_lambda_.4} parent=19 // pred_fallthru
        _
    $region20: #{_lambda_.4} parent=5 // pred_fallthru
      _
    %p192 = scmp.le.s32.totalorder 1, %s9
    %p193 = scmp.lt.s32.totalorder %s9, 3
    %p194 = pnand %p192, %p193
    %p195 = pneg %p194
    // Predicated region
    $region29: #{_lambda_.4} parent=5 // pred_check
      _
    $region30: #{_lambda_.4} parent=5 // pred_check_branch
      %197 = sbr.rel (%p194) target = $region32
    $region31: #{_lambda_.4} parent=5 // pred_region
      %s198 = ssub.s32 %s9, 1
      %s199 = smul.u32 %s19, 2
      %s200 = ssub.s32 0, %s199
      %s201 = smul.u32 %s18, %s200
      %s202 = sadd.s32 %s19, %s201
      %s203 = smul.u32 8, %s202
      %p204 = scmp.lt.s32.totalorder %s18, 1
      %s205 = scalar_select %p204, %s18, 1
      %p206 = scmp.lt.s32.totalorder %s203, 7
      %s207 = scalar_select %p206, %s203, 7
      %s208 = smul.addr %s207, 2
      %s209 = smul.addr %s205, 16
      %s210 = sadd.s32 %s208, %s209
      %s211 = smul.addr %s210, 2
      %s212 = scalar_lea.vmem %s0, %s211
      %p213 = pneg %p57
      %p214 = pneg %p54
      %p215 = pneg %p78
      %p216 = pneg %p75
      %p217 = scmp.lt.s32.totalorder %s18, 1
      %s218 = scalar_select %p217, %s18, 1
      %s219 = smul.addr %s218, 16
      %s220 = smul.addr %s219, 8
      %s221 = scalar_lea.vmem %s2, %s220
      %p222 = pneg %p104
      %p223 = pneg %p101
      %p224 = pneg %p140
      %p225 = pneg %p137
      %s226 = smul.u32 %s19, 2
      %s227 = ssub.s32 0, %s226
      %s228 = smul.u32 %s18, %s227
      %s229 = sadd.s32 %s19, %s228
      %s230 = smul.u32 8, %s229
      %p231 = scmp.lt.s32.totalorder %s18, 1
      %s232 = scalar_select %p231, %s18, 1
      %p233 = scmp.lt.s32.totalorder %s230, 7
      %s234 = scalar_select %p233, %s230, 7
      %s235 = smul.addr %s232, 8
      %s236 = sadd.s32 %s234, %s235
      %s237 = smul.addr %s236, 2
      %s238 = scalar_lea.vmem %s3, %s237
      %s239 = smul.u32 %s19, 2
      %s240 = ssub.s32 0, %s239
      %s241 = smul.u32 %s18, %s240
      %s242 = sadd.s32 %s19, %s241
      %s243 = smul.u32 8, %s242
      %p244 = scmp.lt.s32.totalorder %s18, 1
      %s245 = scalar_select %p244, %s18, 1
      %p246 = scmp.lt.s32.totalorder %s243, 7
      %s247 = scalar_select %p246, %s243, 7
      %s248 = smul.addr %s247, 2
      %s249 = smul.addr %s245, 16
      %s250 = sadd.s32 %s248, %s249
      %s251 = smul.addr %s250, 2
      %s252 = scalar_lea.vmem %s0, %s251
      %s253 = smul.u32 %s19, 2
      %s254 = ssub.s32 0, %s253
      %s255 = smul.u32 %s18, %s254
      %s256 = sadd.s32 %s19, %s255
      %s257 = smul.u32 8, %s256
      %p258 = scmp.lt.s32.totalorder %s18, 1
      %s259 = scalar_select %p258, %s18, 1
      %s260 = smul.addr %s259, 16
      %s261 = smul.addr %s260, 8
      %s262 = scalar_lea.vmem %s2, %s261
      %s263 = smul.u32 %s19, 2
      %s264 = ssub.s32 0, %s263
      %s265 = smul.u32 %s18, %s264
      %s266 = sadd.s32 %s19, %s265
      %s267 = smul.u32 8, %s266
      %p268 = scmp.lt.s32.totalorder %s18, 1
      %s269 = scalar_select %p268, %s18, 1
      %p270 = scmp.lt.s32.totalorder %s267, 7
      %s271 = scalar_select %p270, %s267, 7
      %s272 = smul.addr %s269, 8
      %s273 = sadd.s32 %s271, %s272
      %s274 = smul.addr %s273, 2
      %s275 = scalar_lea.vmem %s3, %s274
      %s276 = smul.u32 %s19, 2
      %s277 = ssub.s32 0, %s276
      %s278 = smul.u32 %s18, %s277
      %s279 = sadd.s32 %s19, %s278
      %s280 = smul.u32 8, %s279
      %p281 = scmp.eq.s32.totalorder %s19, 0
      // Predicated region
      $region33: #{_lambda_.4} parent=31 // pred_check
        %p282 = pneg %p281
      $region34: #{_lambda_.4} parent=31 // pred_check_branch
        %284 = sbr.rel (%p282) target = $region36
      $region35: #{_lambda_.4} parent=31 // pred_region
        %vm285 = vcmask 517120
        %286 = vst.msk [vmem:[#allocation2] sm:$0x3] %vm285, 0.0
        %287 = vst.msk [vmem:[#allocation3] sm:$0x3] %vm285, 0.0
      $region36: #{_lambda_.4} parent=31 // pred_fallthru
        _
      %v288 = vld [vmem:[%s262] sm:$0xff]
      %v289 = vld [vmem:[%s262 + $0x8] sm:$0xff]
      %v290 = vld [vmem:[%s262 + $0x10] sm:$0xff]
      %v291 = vld [vmem:[%s262 + $0x18] sm:$0xff]
      %v292 = vld [vmem:[%s262 + $0x20] sm:$0xff]
      %v293 = vld [vmem:[%s262 + $0x28] sm:$0xff]
      %v294 = vld [vmem:[%s262 + $0x30] sm:$0xff]
      %v295 = vld [vmem:[%s262 + $0x38] sm:$0xff]
      %v296 = vld [vmem:[%s262 + $0x40] sm:$0xff]
      %v297 = vld [vmem:[%s262 + $0x48] sm:$0xff]
      %v298 = vld [vmem:[%s262 + $0x50] sm:$0xff]
      %v299 = vld [vmem:[%s262 + $0x58] sm:$0xff]
      %v300 = vld [vmem:[%s262 + $0x60] sm:$0xff]
      %v301 = vld [vmem:[%s262 + $0x68] sm:$0xff]
      %v302 = vld [vmem:[%s262 + $0x70] sm:$0xff]
      %v303 = vld [vmem:[%s262 + $0x78] sm:$0xff]
      %v304 = vld [vmem:[%s1] sm:$0x3]
      %s305 = smul.u32 %s19, 2
      %s306 = ssub.s32 0, %s305
      %s307 = smul.u32 %s18, %s306
      %s308 = sadd.s32 %s19, %s307
      %s309 = smul.u32 %s308, 8
      loop: start=0, step=1, limit=8
      $region37: #{_lambda_.4} parent=31 // loop_pre_header
        _
      $region38: #{_lambda_.4} parent=31 // loop_header
        %s311 = sphi 0, %s315
        %p312 = scmp.ge.s32.totalorder %s311, 8
      $region39: #{_lambda_.4} parent=31 // loop_header_branch
        %314 = sbr.rel (%p312) target = $region43
      $region40: #{_lambda_.4} parent=31 // loop_body
        %s316 = smul.u32 %s311, 2
        %s317 = ssub.s32 7, %s316
        %s318 = smul.u32 %s18, %s317
        %s319 = sadd.s32 %s311, %s318
        %s320 = smul.u32 %s319, 2
        %s321 = smul.addr %s320, 2
        %s322 = scalar_lea.vmem %s252, %s321
        %v323 = vld [vmem:[%s322] sm:$0xf]
        %s324 = sadd.s32 %s309, %s319
        %v325 = vstv %s324
        %vm326 = vcmp.lt.s32.totalorder %v325, %v304
        %v327 = vsel %vm326, 1, 0
        %v328 = vcvt.s32.f32 %v327
        %v329 = vld [vmem:[#allocation2] sm:$0x3]
        %v330 = vld [vmem:[#allocation3] sm:$0x3]
        %vm331 = vcmask 523264
        %v333 = vsel %vm331, %v329, 0
        %335 = vmatprep.subr.mxu0 %v289
        %336 = vmatpush1.msra.mxu0 %v288
        %337 = vmatprep.subr.mxu0 %v291
        %338 = vmatpush1.msra.mxu0 %v290
        %339 = vmatprep.subr.mxu0 %v293
        %340 = vmatpush1.msra.mxu0 %v292
        %341 = vmatprep.subr.mxu0 %v295
        %342 = vmatpush1.msra.mxu0 %v294
        %343 = vmatprep.subr.mxu0 %v297
        %344 = vmatpush1.msra.mxu0 %v296
        %345 = vmatprep.subr.mxu0 %v299
        %346 = vmatpush1.msra.mxu0 %v298
        %347 = vmatprep.subr.mxu0 %v301
        %348 = vmatpush1.msra.mxu0 %v300
        %349 = vmatprep.subr.mxu0 %v303
        %350 = vmatpush1.msra.mxu0 %v302
        %351 = vmatprep.subr.mxu0 0.0
        %352 = vmatpush1.msra.mxu0 0.0
        %353 = vmatprep.subr.mxu0 0.0
        %354 = vmatpush1.msra.mxu0 0.0
        %355 = vmatprep.subr.mxu0 0.0
        %356 = vmatpush1.msra.mxu0 0.0
        %357 = vmatprep.subr.mxu0 0.0
        %358 = vmatpush1.msra.mxu0 0.0
        %359 = vmatprep.subr.mxu0 0.0
        %360 = vmatpush1.msra.mxu0 0.0
        %361 = vmatprep.subr.mxu0 0.0
        %362 = vmatpush1.msra.mxu0 0.0
        %363 = vmatprep.subr.mxu0 0.0
        %364 = vmatpush1.msra.mxu0 0.0
        %365 = vmatprep.subr.mxu0 0.0
        %366 = vmatpush1.msra.mxu0 0.0
        %367 = vmatprep.subr.mxu0 0.0
        %368 = vmatpush1.msra.mxu0 0.0
        %369 = vmatprep.subr.mxu0 0.0
        %370 = vmatpush1.msra.mxu0 0.0
        %371 = vmatprep.subr.mxu0 0.0
        %372 = vmatpush1.msra.mxu0 0.0
        %373 = vmatprep.subr.mxu0 0.0
        %374 = vmatpush1.msra.mxu0 0.0
        %375 = vmatprep.subr.mxu0 0.0
        %376 = vmatpush1.msra.mxu0 0.0
        %377 = vmatprep.subr.mxu0 0.0
        %378 = vmatpush1.msra.mxu0 0.0
        %379 = vmatprep.subr.mxu0 0.0
        %380 = vmatpush1.msra.mxu0 0.0
        %381 = vmatprep.subr.mxu0 0.0
        %382 = vmatpush1.msra.mxu0 0.0
        %383 = vmatprep.subr.mxu0 0.0
        %384 = vmatpush1.msra.mxu0 0.0
        %385 = vmatprep.subr.mxu0 0.0
        %386 = vmatpush1.msra.mxu0 0.0
        %387 = vmatprep.subr.mxu0 0.0
        %388 = vmatpush1.msra.mxu0 0.0
        %389 = vmatprep.subr.mxu0 0.0
        %390 = vmatpush1.msra.mxu0 0.0
        %391 = vmatprep.subr.mxu0 0.0
        %392 = vmatpush1.msra.mxu0 0.0
        %393 = vmatprep.subr.mxu0 0.0
        %394 = vmatpush1.msra.mxu0 0.0
        %395 = vmatprep.subr.mxu0 0.0
        %396 = vmatpush1.msra.mxu0 0.0
        %397 = vmatprep.subr.mxu0 0.0
        %398 = vmatpush1.msra.mxu0 0.0
        %399 = vmatprep.mubr.f32.mxu0 0.0
        %400 = vmatmul.mubr.f32.gmra.mrb[0].mxu0 %v333
        %v401 = vpop.f32.mrb[0].mxu0
        %v402 = vadd.f32 0.0, %v401
        %v403 = vpop.f32.mrb[0].mxu0
        %v404 = vadd.f32 0.0, %v403
        %405 = vdwg.mxu0
        %v408 = vcombine.low %v402, %v404
        %v410 = vunpack.c.l.s4 1983009808
        %v411 = vunpack.c.0.s8 %v410
        %v412 = vlaneseq
        %v413 = vshrl.u32 %v412, 7
        %v414 = vsub.s32 %v411, %v413
        %v415 = vrot.slane %v408, %v414
        %v417 = vadd.f32 %v323, %v415
        %v418 = vxor.u32 %v417, 2147483648
        %v419 = vmul.f32 %v418, 1.442695
        %v420 = vpow.pop %v419
        %v421 = vadd.f32 %v420, 1.0
        %v422 = vrcp.pop %v421
        %v423 = vmul.f32 1.0, %v422
        %425 = vrot.lane.b32.xlu0 %v417, 64
        %v426 = vpop.permute.xlu0 %425
        %v427 = vrot.slane %v426, 2
        %v429 = vtanh.pop %v427
        %v432 = vunpack.c.l.s4 1983009808
        %v433 = vunpack.c.0.s8 %v432
        %v434 = vlaneseq
        %v435 = vshrl.u32 %v434, 7
        %v436 = vsub.s32 %v433, %v435
        %v437 = vrot.slane %v330, %v436
        %438 = vrot.lane.b32.xlu0 %v437, 64
        %v439 = vpop.permute.xlu0 %438
        %v441 = vmul.f32 %v423, %v439
        %v442 = vmul.f32 %v423, %v429
        %444 = vrot.lane.b32.xlu0 %v442, 64
        %v445 = vpop.permute.xlu0 %444
        %v447 = vadd.f32 %v441, %v445
        %v448 = vtanh.pop %v447
        %v450 = vrot.slane %v423, 2
        %453 = vrot.lane.b32.xlu0 %v448, 64
        %v454 = vpop.permute.xlu0 %453
        %v456 = vmul.f32 %v450, %v454
        %458 = vset.pattern.permute.xlu0 0
        %459 = vperm.xlu0 %458, %v328
        %v460 = vpop.permute.xlu0 %459
        %v464 = vunpack.c.l.s4 1983009808
        %v465 = vunpack.c.0.s8 %v464
        %v466 = vlaneseq
        %v467 = vshrl.u32 %v466, 7
        %v468 = vsub.s32 %v465, %v467
        %v469 = vrot.slane %v447, %v468
        %470 = vrot.lane.b32.xlu0 %v469, 64
        %v471 = vpop.permute.xlu0 %470
        %v473 = vmul.f32 %v460, %v471
        %v474 = vsub.f32 1.0, %v328
        %476 = vset.pattern.permute.xlu0 0
        %477 = vperm.xlu0 %476, %v474
        %v478 = vpop.permute.xlu0 %477
        %v480 = vmul.f32 %v478, %v330
        %v481 = vadd.f32 %v473, %v480
        %vm482 = vcmask 517120
        %483 = vst.msk [vmem:[#allocation3] sm:$0x3] %vm482, %v481
        %v484 = vmul.f32 %v460, %v456
        %v485 = vmul.f32 %v478, %v329
        %v486 = vadd.f32 %v484, %v485
        %487 = vst.msk [vmem:[#allocation2] sm:$0x3] %vm482, %v486
        %s488 = scalar_lea.vmem %s275, %s320
        %489 = vst.msk [vmem:[%s488] sm:$0x3] %vm482, %v484
      $region41: #{_lambda_.4} parent=31 // loop_footer
        %s315 = sadd.s32 1, %s311
      $region42: #{_lambda_.4} parent=31 // loop_footer_branch
        %310 = sbr.rel target = $region38
      $region43: #{_lambda_.4} parent=31 // loop_exit
        _
      %s490 = smul.u32 %s19, 2
      %s491 = ssub.s32 0, %s490
      %s492 = smul.u32 %s18, %s491
      %s493 = sadd.s32 %s19, %s492
      %s494 = smul.u32 8, %s493
      %p495 = scmp.lt.s32.totalorder %s18, 1
      %s496 = scalar_select %p495, %s18, 1
      %p497 = scmp.lt.s32.totalorder %s494, 7
      %s498 = scalar_select %p497, %s494, 7
      %s499 = smul.addr %s496, 8
      %s500 = sadd.s32 %s498, %s499
      %s501 = smul.addr %s500, 2
      %s502 = scalar_lea.vmem %s3, %s501
      // Predicated region
      $region44: #{_lambda_.4} parent=31 // pred_check
        %p503 = pneg %p137
      $region45: #{_lambda_.4} parent=31 // pred_check_branch
        %505 = sbr.rel (%p503) target = $region47
      $region46: #{_lambda_.4} parent=31 // pred_region
        %s506 = smul.u32 %s19, 2
        %s507 = ssub.s32 0, %s506
        %s508 = smul.u32 %s18, %s507
        %s509 = sadd.s32 %s19, %s508
        %s510 = smul.u32 8, %s509
      $region47: #{_lambda_.4} parent=31 // pred_fallthru
        _
    $region32: #{_lambda_.4} parent=5 // pred_fallthru
      _
    %p511 = scmp.le.s32.totalorder 2, %s9
    // Predicated region
    $region48: #{_lambda_.4} parent=5 // pred_check
      %p512 = pneg %p511
    $region49: #{_lambda_.4} parent=5 // pred_check_branch
      %514 = sbr.rel (%p512) target = $region51
    $region50: #{_lambda_.4} parent=5 // pred_region
      %s515 = ssub.s32 %s9, 2
      // Predicated region
      $region52: #{_lambda_.4} parent=50 // pred_check
        %p516 = pneg %p143
      $region53: #{_lambda_.4} parent=50 // pred_check_branch
        %518 = sbr.rel (%p516) target = $region55
      $region54: #{_lambda_.4} parent=50 // pred_region
        %s519 = smul.u32 %s21, 2
        %s520 = ssub.s32 0, %s519
        %s521 = smul.u32 %s20, %s520
        %s522 = sadd.s32 %s21, %s521
        %s523 = smul.u32 8, %s522
        %p524 = scmp.lt.s32.totalorder %s20, 1
        %s525 = scalar_select %p524, %s20, 1
        %p526 = scmp.lt.s32.totalorder %s523, 7
        %s527 = scalar_select %p526, %s523, 7
        %s528 = smul.addr %s525, 8
        %s529 = sadd.s32 %s527, %s528
        %s530 = smul.addr %s529, 2
        %s531 = scalar_lea.vmem %s3, %s530
      $region55: #{_lambda_.4} parent=50 // pred_fallthru
        _
    $region51: #{_lambda_.4} parent=5 // pred_fallthru
      _
  $region6: #{_lambda_.4} parent=0 // loop_footer
    %s13 = sadd.s32 1, %s9
  $region7: #{_lambda_.4} parent=0 // loop_footer_branch
    %8 = sbr.rel target = $region3
  $region8: #{_lambda_.4} parent=0 // loop_exit
    _

</llo_original>
